<compile_context>
chip_gen: v7x
topology: tpu7x:2x2x1
jax: 0.10.0
libtpu: 0.0.40
codegen_flags: <defaults>
</compile_context>

<pallas_src>
import functools
import math

import jax
import jax.numpy as jnp
from jax.experimental import pallas as pl
from jax.experimental.pallas import tpu as pltpu

# -------------------- model config (small, BERT-shaped) --------------------
CFG = dict(
    vocab=100,       # vocab size (bert-base: 30522)
    max_pos=16,      # max position embeddings
    type_vocab=2,    # token type vocab
    hidden=32,       # hidden size (bert-base: 768)
    heads=2,         # attention heads (bert-base: 12)
    ffn=64,          # intermediate size (bert-base: 3072)
    layers=2,        # encoder layers (bert-base: 12)
    classes=3,       # nn.Linear(768, 3)
)
B, S = 2, 8


# ------------------------------ fused kernel -------------------------------
def _ln(x, g, b):
    # f32 throughout (VPU work stays f32; only dot inputs are bf16).
    mu = jnp.mean(x, axis=-1, keepdims=True)
    var = jnp.mean((x - mu) * (x - mu), axis=-1, keepdims=True)
    return (x - mu) * jax.lax.rsqrt(var + 1e-12) * g + b


def _gelu(x):
    # TODO(synk): tanh-approx GELU; HF BERT default is the exact erf GELU (small drift).
    c = math.sqrt(2.0 / math.pi)
    return 0.5 * x * (1.0 + jnp.tanh(c * (x + 0.044715 * x * x * x)))


def _bert_kernel(h0_ref, mask_ref, eg_ref, eb_ref,
                 qkvw_ref, qkvb_ref, ow_ref, ob_ref, g1_ref, b1_ref,
                 iw_ref, ib_ref, fw_ref, fb_ref, g2_ref, b2_ref,
                 pw_ref, pb_ref, cw_ref, cb_ref,
                 logits_ref, h_scr,
                 *, batch, seq, hidden, heads):
    dh = hidden // heads
    layer = pl.program_id(0)

    # --- grid step 0: embedding LayerNorm into the persistent VMEM carry ----
    @pl.when(layer == 0)
    def _():
        h_scr[...] = _ln(h0_ref[...], eg_ref[...], eb_ref[...])

    h = h_scr[...]                                               # (B*S, H) f32

    # --- self-attention: fused QKV matmul (bf16 operands, f32 acc).
    #     Q columns of qkv_w / qkv_b are pre-scaled by 1/sqrt(dh) at init time,
    #     so scores need no extra scale.
    qkv = jnp.dot(h.astype(jnp.bfloat16), qkvw_ref[...],
                  preferred_element_type=jnp.float32) + qkvb_ref[...]   # (B*S, 3H)
    add_mask = mask_ref[...]          # (B*S, B*S) block-diagonal + key-padding additive
    ow = ow_ref[...]                  # (H, H) bf16

    acc = None
    # TODO(synk): at heads ~ 12 switch this trace-time unroll to
    # lax.fori_loop(..., unroll=True) accumulating into VMEM scratch to bound vregs.
    for hi in range(heads):
        q = qkv[:, hi * dh:(hi + 1) * dh].astype(jnp.bfloat16)
        k = qkv[:, hidden + hi * dh: hidden + (hi + 1) * dh].astype(jnp.bfloat16)
        v = qkv[:, 2 * hidden + hi * dh: 2 * hidden + (hi + 1) * dh].astype(jnp.bfloat16)
        # one full-batch score matmul per head; cross-example pairs masked out
        sc = jax.lax.dot_general(q, k, (((1,), (1,)), ((), ())),
                                 preferred_element_type=jnp.float32)    # (B*S, B*S)
        sc = sc + add_mask
        sc = sc - jnp.max(sc, axis=-1, keepdims=True)                   # f32 softmax
        p = jnp.exp(sc)
        p = p * pl.reciprocal(jnp.sum(p, axis=-1, keepdims=True), approx=True)
        o_h = jnp.dot(p.astype(jnp.bfloat16), v,
                      preferred_element_type=jnp.float32)               # (B*S, dh)
        # fold this head's slice of the output projection in here (avoids a
        # lane-unaligned concat of per-head outputs)
        contrib = jnp.dot(o_h.astype(jnp.bfloat16), ow[hi * dh:(hi + 1) * dh, :],
                          preferred_element_type=jnp.float32)           # (B*S, H)
        acc = contrib if acc is None else acc + contrib
    attn_out = acc + ob_ref[...]                                        # (B*S, H)

    # --- output proj epilogue: residual + LN ---------------------------------
    h = _ln(h + attn_out, g1_ref[...], b1_ref[...])

    # --- FFN with residual + LN epilogue (bf16 dot inputs, f32 GELU) ---------
    ff = _gelu(jnp.dot(h.astype(jnp.bfloat16), iw_ref[...],
                       preferred_element_type=jnp.float32) + ib_ref[...])
    ff = jnp.dot(ff.astype(jnp.bfloat16), fw_ref[...],
                 preferred_element_type=jnp.float32) + fb_ref[...]
    h = _ln(h + ff, g2_ref[...], b2_ref[...])
    h_scr[...] = h

    # --- last grid step: pooler(tanh) -> dropout(eval)=identity -> Linear(H,3)
    @pl.when(layer == pl.num_programs(0) - 1)
    def _():
        # [CLS] rows (row b*seq per example) via a sublane-strided read.
        cls = h_scr[pl.ds(0, batch, stride=seq), :]                     # (B, H) f32
        pooled = jnp.tanh(jnp.dot(cls.astype(jnp.bfloat16), pw_ref[...],
                                  preferred_element_type=jnp.float32) + pb_ref[...])
        # self.dropout(0.3): identity in eval mode.
        logits_ref[...] = (jnp.dot(pooled.astype(jnp.bfloat16), cw_ref[...],
                                   preferred_element_type=jnp.float32) + cb_ref[...])


# ------------------------------- model glue --------------------------------
def bert_class_forward(params, input_ids, attn_mask, token_type_ids):
    b, s = input_ids.shape
    hidden, heads = CFG["hidden"], CFG["heads"]
    ffn, layers, classes = CFG["ffn"], CFG["layers"], CFG["classes"]

    # Embedding gather + sum (XLA glue; everything after runs in one Pallas call).
    pos_ids = jnp.arange(s)
    h0 = (params["word_emb"][input_ids]
          + params["pos_emb"][pos_ids][None, :, :]
          + params["type_emb"][token_type_ids]).reshape(b * s, hidden)
    # TODO(synk): embedding / attention / hidden dropouts are identity (eval mode).

    # Block-diagonal additive mask over the flattened (B*S) key axis:
    # -1e4 on cross-example pairs and on padded keys, 0 otherwise (matches HF's
    # extended_attention_mask value). Lets attention run as one full-batch matmul
    # per head inside the kernel.
    key_valid = attn_mask.astype(jnp.float32).reshape(1, b * s)              # (1, B*S)
    same_example = jnp.kron(jnp.eye(b, dtype=jnp.float32),
                            jnp.ones((s, s), jnp.float32))                   # (B*S, B*S)
    add_mask = (1.0 - same_example * key_valid) * -10000.0                   # (B*S, B*S)

    c0 = lambda l: (0, 0)
    perl = lambda l: (l, 0, 0)
    kern = functools.partial(_bert_kernel, batch=b, seq=s, hidden=hidden, heads=heads)

    return pl.pallas_call(
        kern,
        out_shape=jax.ShapeDtypeStruct((b, classes), jnp.float32),
        grid=(layers,),
        in_specs=[
            pl.BlockSpec((b * s, hidden), c0),                   # h0 embeddings (f32)
            pl.BlockSpec((b * s, b * s), c0),                    # block-diag additive mask
            pl.BlockSpec((1, hidden), c0),                       # emb LN gamma
            pl.BlockSpec((1, hidden), c0),                       # emb LN beta
            # TODO(synk): for v5e at bert-base scale consider pipeline_mode=pl.Buffered(3)
            # on the large streamed weights below.
            pl.BlockSpec((None, hidden, 3 * hidden), perl),      # fused QKV weight (bf16)
            pl.BlockSpec((None, 1, 3 * hidden), perl),           # fused QKV bias (f32)
            pl.BlockSpec((None, hidden, hidden), perl),          # attn out weight (bf16)
            pl.BlockSpec((None, 1, hidden), perl),               # attn out bias
            pl.BlockSpec((None, 1, hidden), perl),               # LN1 gamma
            pl.BlockSpec((None, 1, hidden), perl),               # LN1 beta
            pl.BlockSpec((None, hidden, ffn), perl),             # FFN in weight (bf16)
            pl.BlockSpec((None, 1, ffn), perl),                  # FFN in bias
            pl.BlockSpec((None, ffn, hidden), perl),             # FFN out weight (bf16)
            pl.BlockSpec((None, 1, hidden), perl),               # FFN out bias
            pl.BlockSpec((None, 1, hidden), perl),               # LN2 gamma
            pl.BlockSpec((None, 1, hidden), perl),               # LN2 beta
            pl.BlockSpec((hidden, hidden), c0),                  # pooler weight (bf16)
            pl.BlockSpec((1, hidden), c0),                       # pooler bias
            pl.BlockSpec((hidden, classes), c0),                 # classifier weight (bf16)
            pl.BlockSpec((1, classes), c0),                      # classifier bias
        ],
        out_specs=pl.BlockSpec((b, classes), c0),
        scratch_shapes=[pltpu.VMEM((b * s, hidden), jnp.float32)],   # activation carry
        compiler_params=pltpu.CompilerParams(
            # TODO(synk): on v7x, add a leading "parallel" batch grid axis so the
            # second TensorCore is used; layer axis stays sequential.
            dimension_semantics=("arbitrary",),
            vmem_limit_bytes=32 * 1024 * 1024),
    )(h0, add_mask, params["emb_ln_g"], params["emb_ln_b"],
      params["qkv_w"], params["qkv_b"], params["o_w"], params["o_b"],
      params["ln1_g"], params["ln1_b"], params["i_w"], params["i_b"],
      params["f_w"], params["f_b"], params["ln2_g"], params["ln2_b"],
      params["pooler_w"], params["pooler_b"], params["cls_w"], params["cls_b"])


def init_params(key):
    vocab, max_pos, type_vocab = CFG["vocab"], CFG["max_pos"], CFG["type_vocab"]
    hidden, heads = CFG["hidden"], CFG["heads"]
    ffn, layers, classes = CFG["ffn"], CFG["layers"], CFG["classes"]

    counter = [0]

    def norm(shape):
        counter[0] += 1
        return 0.02 * jax.random.normal(jax.random.fold_in(key, counter[0]),
                                        shape, dtype=jnp.float32)

    ones = lambda shape: jnp.ones(shape, jnp.float32)
    zeros = lambda shape: jnp.zeros(shape, jnp.float32)
    bf16 = lambda x: x.astype(jnp.bfloat16)

    # Fold the 1/sqrt(d_head) attention scale into the Q columns of the fused
    # QKV weight/bias (exact: 0.25 is a power of two, lossless in bf16).
    scale = 1.0 / math.sqrt(hidden // heads)
    qcol = jnp.concatenate([jnp.full((hidden,), scale, jnp.float32),
                            jnp.ones((2 * hidden,), jnp.float32)])

    return {
        "word_emb": norm((vocab, hidden)),
        "pos_emb": norm((max_pos, hidden)),
        "type_emb": norm((type_vocab, hidden)),
        "emb_ln_g": ones((1, hidden)), "emb_ln_b": zeros((1, hidden)),
        # per-layer weights stacked on a leading layer axis (streamed by the grid);
        # matmul weight matrices stored in bf16, biases / LN params in f32.
        "qkv_w": bf16(norm((layers, hidden, 3 * hidden)) * qcol),
        "qkv_b": zeros((layers, 1, 3 * hidden)) * qcol,
        "o_w": bf16(norm((layers, hidden, hidden))), "o_b": zeros((layers, 1, hidden)),
        "ln1_g": ones((layers, 1, hidden)), "ln1_b": zeros((layers, 1, hidden)),
        "i_w": bf16(norm((layers, hidden, ffn))), "i_b": zeros((layers, 1, ffn)),
        "f_w": bf16(norm((layers, ffn, hidden))), "f_b": zeros((layers, 1, hidden)),
        "ln2_g": ones((layers, 1, hidden)), "ln2_b": zeros((layers, 1, hidden)),
        "pooler_w": bf16(norm((hidden, hidden))), "pooler_b": zeros((1, hidden)),
        "cls_w": bf16(norm((hidden, classes))), "cls_b": zeros((1, classes)),
    }


if __name__ == "__main__":
    root = jax.random.PRNGKey(0)
    k_params, k_ids = jax.random.split(root, 2)

    params = init_params(k_params)

    input_ids = jax.random.randint(k_ids, (B, S), 0, CFG["vocab"], dtype=jnp.int32)
    attn_mask = jnp.ones((B, S), dtype=jnp.int32).at[:, S - 2:].set(0)   # last 2 = padding
    token_type_ids = jnp.zeros((B, S), dtype=jnp.int32).at[:, S // 2:].set(1)

    logits = jax.jit(bert_class_forward)(params, input_ids, attn_mask, token_type_ids)
    logits = jax.block_until_ready(logits)

    assert logits.shape == (B, CFG["classes"])
    assert logits.dtype == jnp.float32
    assert bool(jnp.all(jnp.isfinite(logits)))
    print("KERNEL_OK")
</pallas_src>

<mosaic_0001>
module attributes {stable_mosaic.version = 11 : i64} {
  func.func @_bert_kernel(%arg0: i32, %arg1: memref<16x32xf32, #tpu.memory_space<vmem>>, %arg2: memref<16x16xf32, #tpu.memory_space<vmem>>, %arg3: memref<1x32xf32, #tpu.memory_space<vmem>>, %arg4: memref<1x32xf32, #tpu.memory_space<vmem>>, %arg5: memref<1x32x96xbf16, #tpu.memory_space<vmem>>, %arg6: memref<1x1x96xf32, #tpu.memory_space<vmem>>, %arg7: memref<1x32x32xbf16, #tpu.memory_space<vmem>>, %arg8: memref<1x1x32xf32, #tpu.memory_space<vmem>>, %arg9: memref<1x1x32xf32, #tpu.memory_space<vmem>>, %arg10: memref<1x1x32xf32, #tpu.memory_space<vmem>>, %arg11: memref<1x32x64xbf16, #tpu.memory_space<vmem>>, %arg12: memref<1x1x64xf32, #tpu.memory_space<vmem>>, %arg13: memref<1x64x32xbf16, #tpu.memory_space<vmem>>, %arg14: memref<1x1x32xf32, #tpu.memory_space<vmem>>, %arg15: memref<1x1x32xf32, #tpu.memory_space<vmem>>, %arg16: memref<1x1x32xf32, #tpu.memory_space<vmem>>, %arg17: memref<32x32xbf16, #tpu.memory_space<vmem>>, %arg18: memref<1x32xf32, #tpu.memory_space<vmem>>, %arg19: memref<32x3xbf16, #tpu.memory_space<vmem>>, %arg20: memref<1x3xf32, #tpu.memory_space<vmem>>, %arg21: memref<2x3xf32, #tpu.memory_space<vmem>>, %arg22: memref<16x32xf32, #tpu.memory_space<vmem>>) attributes {dimension_semantics = [#tpu.dimension_semantics<arbitrary>], iteration_bounds = array<i64: 2>, scalar_prefetch = 0 : i64, scratch_operands = 1 : i64, tpu.core_type = #tpu.core_type<tc>, window_params = [{pipeline_mode = #tpu.pipeline_mode<synchronous>, transform_indices = @transform_0, window_bounds = array<i64: 16, 32>}, {pipeline_mode = #tpu.pipeline_mode<synchronous>, transform_indices = @transform_1, window_bounds = array<i64: 16, 16>}, {pipeline_mode = #tpu.pipeline_mode<synchronous>, transform_indices = @transform_2, window_bounds = array<i64: 1, 32>}, {pipeline_mode = #tpu.pipeline_mode<synchronous>, transform_indices = @transform_3, window_bounds = array<i64: 1, 32>}, {transform_indices = @transform_4, window_bounds = array<i64: 1, 32, 96>}, {transform_indices = @transform_5, window_bounds = array<i64: 1, 1, 96>}, {transform_indices = @transform_6, window_bounds = array<i64: 1, 32, 32>}, {transform_indices = @transform_7, window_bounds = array<i64: 1, 1, 32>}, {transform_indices = @transform_8, window_bounds = array<i64: 1, 1, 32>}, {transform_indices = @transform_9, window_bounds = array<i64: 1, 1, 32>}, {transform_indices = @transform_10, window_bounds = array<i64: 1, 32, 64>}, {transform_indices = @transform_11, window_bounds = array<i64: 1, 1, 64>}, {transform_indices = @transform_12, window_bounds = array<i64: 1, 64, 32>}, {transform_indices = @transform_13, window_bounds = array<i64: 1, 1, 32>}, {transform_indices = @transform_14, window_bounds = array<i64: 1, 1, 32>}, {transform_indices = @transform_15, window_bounds = array<i64: 1, 1, 32>}, {pipeline_mode = #tpu.pipeline_mode<synchronous>, transform_indices = @transform_16, window_bounds = array<i64: 32, 32>}, {pipeline_mode = #tpu.pipeline_mode<synchronous>, transform_indices = @transform_17, window_bounds = array<i64: 1, 32>}, {pipeline_mode = #tpu.pipeline_mode<synchronous>, transform_indices = @transform_18, window_bounds = array<i64: 32, 3>}, {pipeline_mode = #tpu.pipeline_mode<synchronous>, transform_indices = @transform_19, window_bounds = array<i64: 1, 3>}, {pipeline_mode = #tpu.pipeline_mode<synchronous>, transform_indices = @transform_20, window_bounds = array<i64: 2, 3>}]} {
    %c0_i32 = arith.constant 0 : i32
    %0 = arith.cmpi eq, %arg0, %c0_i32 : i32
    %1 = arith.extui %0 : i1 to i32
    %c0_i32_0 = arith.constant 0 : i32
    %2 = arith.cmpi ne, %1, %c0_i32_0 : i32
    scf.if %2 {
      %c0_69 = arith.constant 0 : index
      %c0_70 = arith.constant 0 : index
      %157 = vector.load %arg1[%c0_69, %c0_70] : memref<16x32xf32, #tpu.memory_space<vmem>>, vector<16x32xf32>
      %c0_71 = arith.constant 0 : index
      %c0_72 = arith.constant 0 : index
      %158 = vector.load %arg3[%c0_71, %c0_72] : memref<1x32xf32, #tpu.memory_space<vmem>>, vector<1x32xf32>
      %c0_73 = arith.constant 0 : index
      %c0_74 = arith.constant 0 : index
      %159 = vector.load %arg4[%c0_73, %c0_74] : memref<1x32xf32, #tpu.memory_space<vmem>>, vector<1x32xf32>
      %cst_75 = arith.constant dense<0.000000e+00> : vector<16xf32>
      %160 = vector.multi_reduction <add>, %157, %cst_75 [1] : vector<16x32xf32> to vector<16xf32>
      %161 = vector.shape_cast %160 : vector<16xf32> to vector<16x1xf32>
      %cst_76 = arith.constant 3.200000e+01 : f32
      %162 = vector.broadcast %cst_76 : f32 to vector<16x1xf32>
      %163 = arith.divf %161, %162 : vector<16x1xf32>
      %164 = vector.broadcast %163 : vector<16x1xf32> to vector<16x32xf32>
      %165 = arith.subf %157, %164 : vector<16x32xf32>
      %166 = vector.broadcast %163 : vector<16x1xf32> to vector<16x32xf32>
      %167 = arith.subf %157, %166 : vector<16x32xf32>
      %168 = arith.mulf %165, %167 : vector<16x32xf32>
      %cst_77 = arith.constant dense<0.000000e+00> : vector<16xf32>
      %169 = vector.multi_reduction <add>, %168, %cst_77 [1] : vector<16x32xf32> to vector<16xf32>
      %170 = vector.shape_cast %169 : vector<16xf32> to vector<16x1xf32>
      %cst_78 = arith.constant 3.200000e+01 : f32
      %171 = vector.broadcast %cst_78 : f32 to vector<16x1xf32>
      %172 = arith.divf %170, %171 : vector<16x1xf32>
      %173 = vector.broadcast %163 : vector<16x1xf32> to vector<16x32xf32>
      %174 = arith.subf %157, %173 : vector<16x32xf32>
      %cst_79 = arith.constant 9.99999996E-13 : f32
      %175 = vector.broadcast %cst_79 : f32 to vector<16x1xf32>
      %176 = arith.addf %172, %175 : vector<16x1xf32>
      %177 = math.rsqrt %176 : vector<16x1xf32>
      %178 = vector.broadcast %177 : vector<16x1xf32> to vector<16x32xf32>
      %179 = arith.mulf %174, %178 : vector<16x32xf32>
      %180 = vector.broadcast %158 : vector<1x32xf32> to vector<16x32xf32>
      %181 = arith.mulf %179, %180 : vector<16x32xf32>
      %182 = vector.broadcast %159 : vector<1x32xf32> to vector<16x32xf32>
      %183 = arith.addf %181, %182 : vector<16x32xf32>
      %c0_80 = arith.constant 0 : index
      %c0_81 = arith.constant 0 : index
      %184 = vector.load %arg22[%c0_80, %c0_81] : memref<16x32xf32, #tpu.memory_space<vmem>>, vector<16x32xf32>
      tpu.vector_store %arg22[%c0_80, %c0_81], %183 {strides = array<i32>} : memref<16x32xf32, #tpu.memory_space<vmem>>, vector<16x32xf32>,
    } else {
    }
    %c0 = arith.constant 0 : index
    %c0_1 = arith.constant 0 : index
    %3 = vector.load %arg22[%c0, %c0_1] : memref<16x32xf32, #tpu.memory_space<vmem>>, vector<16x32xf32>
    %4 = arith.truncf %3 : vector<16x32xf32> to vector<16x32xbf16>
    %c0_2 = arith.constant 0 : index
    %c0_3 = arith.constant 0 : index
    %c0_4 = arith.constant 0 : index
    %5 = vector.load %arg5[%c0_2, %c0_3, %c0_4] : memref<1x32x96xbf16, #tpu.memory_space<vmem>>, vector<1x32x96xbf16>
    %6 = vector.shape_cast %5 : vector<1x32x96xbf16> to vector<32x96xbf16>
    %cst = arith.constant dense<0.000000e+00> : vector<16x96xf32>
    %7 = tpu.matmul %4, %6, %cst {dimension_numbers = #tpu.dot_dimension_numbers<[1], [0], [0], [1], [0, 0, 1, 1], [], []>} : vector<16x32xbf16>, vector<32x96xbf16>, vector<16x96xf32> -> vector<16x96xf32>
    %c0_5 = arith.constant 0 : index
    %c0_6 = arith.constant 0 : index
    %c0_7 = arith.constant 0 : index
    %8 = vector.load %arg6[%c0_5, %c0_6, %c0_7] : memref<1x1x96xf32, #tpu.memory_space<vmem>>, vector<1x1x96xf32>
    %9 = vector.shape_cast %8 : vector<1x1x96xf32> to vector<1x96xf32>
    %10 = vector.broadcast %9 : vector<1x96xf32> to vector<16x96xf32>
    %11 = arith.addf %7, %10 : vector<16x96xf32>
    %c0_8 = arith.constant 0 : index
    %c0_9 = arith.constant 0 : index
    %12 = vector.load %arg2[%c0_8, %c0_9] : memref<16x16xf32, #tpu.memory_space<vmem>>, vector<16x16xf32>
    %c0_10 = arith.constant 0 : index
    %c0_11 = arith.constant 0 : index
    %c0_12 = arith.constant 0 : index
    %13 = vector.load %arg7[%c0_10, %c0_11, %c0_12] : memref<1x32x32xbf16, #tpu.memory_space<vmem>>, vector<1x32x32xbf16>
    %14 = vector.shape_cast %13 : vector<1x32x32xbf16> to vector<32x32xbf16>
    %15 = vector.extract_strided_slice %11 {offsets = [0, 0], sizes = [16, 16], strides = [1, 1]} : vector<16x96xf32> to vector<16x16xf32>
    %16 = arith.truncf %15 : vector<16x16xf32> to vector<16x16xbf16>
    %17 = vector.extract_strided_slice %11 {offsets = [0, 32], sizes = [16, 16], strides = [1, 1]} : vector<16x96xf32> to vector<16x16xf32>
    %18 = arith.truncf %17 : vector<16x16xf32> to vector<16x16xbf16>
    %19 = vector.extract_strided_slice %11 {offsets = [0, 64], sizes = [16, 16], strides = [1, 1]} : vector<16x96xf32> to vector<16x16xf32>
    %20 = arith.truncf %19 : vector<16x16xf32> to vector<16x16xbf16>
    %cst_13 = arith.constant dense<0.000000e+00> : vector<16x16xf32>
    %21 = tpu.matmul %16, %18, %cst_13 {dimension_numbers = #tpu.dot_dimension_numbers<[1], [1], [0], [0], [0, 0, 1, 0], [], []>} : vector<16x16xbf16>, vector<16x16xbf16>, vector<16x16xf32> -> vector<16x16xf32>
    %22 = arith.addf %21, %12 : vector<16x16xf32>
    %cst_14 = arith.constant dense<0xFF800000> : vector<16xf32>
    %23 = vector.multi_reduction <maximumf>, %22, %cst_14 [1] : vector<16x16xf32> to vector<16xf32>
    %24 = vector.shape_cast %23 : vector<16xf32> to vector<16x1xf32>
    %25 = vector.broadcast %24 : vector<16x1xf32> to vector<16x16xf32>
    %26 = arith.subf %22, %25 : vector<16x16xf32>
    %27 = math.exp %26 : vector<16x16xf32>
    %cst_15 = arith.constant dense<0.000000e+00> : vector<16xf32>
    %28 = vector.multi_reduction <add>, %27, %cst_15 [1] : vector<16x16xf32> to vector<16xf32>
    %29 = vector.shape_cast %28 : vector<16xf32> to vector<16x1xf32>
    %30 = tpu.reciprocal %29 {approx = true} : vector<16x1xf32> -> vector<16x1xf32>
    %31 = vector.broadcast %30 : vector<16x1xf32> to vector<16x16xf32>
    %32 = arith.mulf %27, %31 : vector<16x16xf32>
    %33 = arith.truncf %32 : vector<16x16xf32> to vector<16x16xbf16>
    %cst_16 = arith.constant dense<0.000000e+00> : vector<16x16xf32>
    %34 = tpu.matmul %33, %20, %cst_16 {dimension_numbers = #tpu.dot_dimension_numbers<[1], [0], [0], [1], [0, 0, 1, 1], [], []>} : vector<16x16xbf16>, vector<16x16xbf16>, vector<16x16xf32> -> vector<16x16xf32>
    %35 = arith.truncf %34 : vector<16x16xf32> to vector<16x16xbf16>
    %36 = vector.extract_strided_slice %14 {offsets = [0, 0], sizes = [16, 32], strides = [1, 1]} : vector<32x32xbf16> to vector<16x32xbf16>
    %cst_17 = arith.constant dense<0.000000e+00> : vector<16x32xf32>
    %37 = tpu.matmul %35, %36, %cst_17 {dimension_numbers = #tpu.dot_dimension_numbers<[1], [0], [0], [1], [0, 0, 1, 1], [], []>} : vector<16x16xbf16>, vector<16x32xbf16>, vector<16x32xf32> -> vector<16x32xf32>
    %38 = vector.extract_strided_slice %11 {offsets = [0, 16], sizes = [16, 16], strides = [1, 1]} : vector<16x96xf32> to vector<16x16xf32>
    %39 = arith.truncf %38 : vector<16x16xf32> to vector<16x16xbf16>
    %40 = vector.extract_strided_slice %11 {offsets = [0, 48], sizes = [16, 16], strides = [1, 1]} : vector<16x96xf32> to vector<16x16xf32>
    %41 = arith.truncf %40 : vector<16x16xf32> to vector<16x16xbf16>
    %42 = vector.extract_strided_slice %11 {offsets = [0, 80], sizes = [16, 16], strides = [1, 1]} : vector<16x96xf32> to vector<16x16xf32>
    %43 = arith.truncf %42 : vector<16x16xf32> to vector<16x16xbf16>
    %cst_18 = arith.constant dense<0.000000e+00> : vector<16x16xf32>
    %44 = tpu.matmul %39, %41, %cst_18 {dimension_numbers = #tpu.dot_dimension_numbers<[1], [1], [0], [0], [0, 0, 1, 0], [], []>} : vector<16x16xbf16>, vector<16x16xbf16>, vector<16x16xf32> -> vector<16x16xf32>
    %45 = arith.addf %44, %12 : vector<16x16xf32>
    %cst_19 = arith.constant dense<0xFF800000> : vector<16xf32>
    %46 = vector.multi_reduction <maximumf>, %45, %cst_19 [1] : vector<16x16xf32> to vector<16xf32>
    %47 = vector.shape_cast %46 : vector<16xf32> to vector<16x1xf32>
    %48 = vector.broadcast %47 : vector<16x1xf32> to vector<16x16xf32>
    %49 = arith.subf %45, %48 : vector<16x16xf32>
    %50 = math.exp %49 : vector<16x16xf32>
    %cst_20 = arith.constant dense<0.000000e+00> : vector<16xf32>
    %51 = vector.multi_reduction <add>, %50, %cst_20 [1] : vector<16x16xf32> to vector<16xf32>
    %52 = vector.shape_cast %51 : vector<16xf32> to vector<16x1xf32>
    %53 = tpu.reciprocal %52 {approx = true} : vector<16x1xf32> -> vector<16x1xf32>
    %54 = vector.broadcast %53 : vector<16x1xf32> to vector<16x16xf32>
    %55 = arith.mulf %50, %54 : vector<16x16xf32>
    %56 = arith.truncf %55 : vector<16x16xf32> to vector<16x16xbf16>
    %cst_21 = arith.constant dense<0.000000e+00> : vector<16x16xf32>
    %57 = tpu.matmul %56, %43, %cst_21 {dimension_numbers = #tpu.dot_dimension_numbers<[1], [0], [0], [1], [0, 0, 1, 1], [], []>} : vector<16x16xbf16>, vector<16x16xbf16>, vector<16x16xf32> -> vector<16x16xf32>
    %58 = arith.truncf %57 : vector<16x16xf32> to vector<16x16xbf16>
    %59 = vector.extract_strided_slice %14 {offsets = [16, 0], sizes = [16, 32], strides = [1, 1]} : vector<32x32xbf16> to vector<16x32xbf16>
    %cst_22 = arith.constant dense<0.000000e+00> : vector<16x32xf32>
    %60 = tpu.matmul %58, %59, %cst_22 {dimension_numbers = #tpu.dot_dimension_numbers<[1], [0], [0], [1], [0, 0, 1, 1], [], []>} : vector<16x16xbf16>, vector<16x32xbf16>, vector<16x32xf32> -> vector<16x32xf32>
    %61 = arith.addf %37, %60 : vector<16x32xf32>
    %c0_23 = arith.constant 0 : index
    %c0_24 = arith.constant 0 : index
    %c0_25 = arith.constant 0 : index
    %62 = vector.load %arg8[%c0_23, %c0_24, %c0_25] : memref<1x1x32xf32, #tpu.memory_space<vmem>>, vector<1x1x32xf32>
    %63 = vector.shape_cast %62 : vector<1x1x32xf32> to vector<1x32xf32>
    %64 = vector.broadcast %63 : vector<1x32xf32> to vector<16x32xf32>
    %65 = arith.addf %61, %64 : vector<16x32xf32>
    %66 = arith.addf %3, %65 : vector<16x32xf32>
    %c0_26 = arith.constant 0 : index
    %c0_27 = arith.constant 0 : index
    %c0_28 = arith.constant 0 : index
    %67 = vector.load %arg9[%c0_26, %c0_27, %c0_28] : memref<1x1x32xf32, #tpu.memory_space<vmem>>, vector<1x1x32xf32>
    %68 = vector.shape_cast %67 : vector<1x1x32xf32> to vector<1x32xf32>
    %c0_29 = arith.constant 0 : index
    %c0_30 = arith.constant 0 : index
    %c0_31 = arith.constant 0 : index
    %69 = vector.load %arg10[%c0_29, %c0_30, %c0_31] : memref<1x1x32xf32, #tpu.memory_space<vmem>>, vector<1x1x32xf32>
    %70 = vector.shape_cast %69 : vector<1x1x32xf32> to vector<1x32xf32>
    %cst_32 = arith.constant dense<0.000000e+00> : vector<16xf32>
    %71 = vector.multi_reduction <add>, %66, %cst_32 [1] : vector<16x32xf32> to vector<16xf32>
    %72 = vector.shape_cast %71 : vector<16xf32> to vector<16x1xf32>
    %cst_33 = arith.constant 3.200000e+01 : f32
    %73 = vector.broadcast %cst_33 : f32 to vector<16x1xf32>
    %74 = arith.divf %72, %73 : vector<16x1xf32>
    %75 = vector.broadcast %74 : vector<16x1xf32> to vector<16x32xf32>
    %76 = arith.subf %66, %75 : vector<16x32xf32>
    %77 = vector.broadcast %74 : vector<16x1xf32> to vector<16x32xf32>
    %78 = arith.subf %66, %77 : vector<16x32xf32>
    %79 = arith.mulf %76, %78 : vector<16x32xf32>
    %cst_34 = arith.constant dense<0.000000e+00> : vector<16xf32>
    %80 = vector.multi_reduction <add>, %79, %cst_34 [1] : vector<16x32xf32> to vector<16xf32>
    %81 = vector.shape_cast %80 : vector<16xf32> to vector<16x1xf32>
    %cst_35 = arith.constant 3.200000e+01 : f32
    %82 = vector.broadcast %cst_35 : f32 to vector<16x1xf32>
    %83 = arith.divf %81, %82 : vector<16x1xf32>
    %84 = vector.broadcast %74 : vector<16x1xf32> to vector<16x32xf32>
    %85 = arith.subf %66, %84 : vector<16x32xf32>
    %cst_36 = arith.constant 9.99999996E-13 : f32
    %86 = vector.broadcast %cst_36 : f32 to vector<16x1xf32>
    %87 = arith.addf %83, %86 : vector<16x1xf32>
    %88 = math.rsqrt %87 : vector<16x1xf32>
    %89 = vector.broadcast %88 : vector<16x1xf32> to vector<16x32xf32>
    %90 = arith.mulf %85, %89 : vector<16x32xf32>
    %91 = vector.broadcast %68 : vector<1x32xf32> to vector<16x32xf32>
    %92 = arith.mulf %90, %91 : vector<16x32xf32>
    %93 = vector.broadcast %70 : vector<1x32xf32> to vector<16x32xf32>
    %94 = arith.addf %92, %93 : vector<16x32xf32>
    %95 = arith.truncf %94 : vector<16x32xf32> to vector<16x32xbf16>
    %c0_37 = arith.constant 0 : index
    %c0_38 = arith.constant 0 : index
    %c0_39 = arith.constant 0 : index
    %96 = vector.load %arg11[%c0_37, %c0_38, %c0_39] : memref<1x32x64xbf16, #tpu.memory_space<vmem>>, vector<1x32x64xbf16>
    %97 = vector.shape_cast %96 : vector<1x32x64xbf16> to vector<32x64xbf16>
    %cst_40 = arith.constant dense<0.000000e+00> : vector<16x64xf32>
    %98 = tpu.matmul %95, %97, %cst_40 {dimension_numbers = #tpu.dot_dimension_numbers<[1], [0], [0], [1], [0, 0, 1, 1], [], []>} : vector<16x32xbf16>, vector<32x64xbf16>, vector<16x64xf32> -> vector<16x64xf32>
    %c0_41 = arith.constant 0 : index
    %c0_42 = arith.constant 0 : index
    %c0_43 = arith.constant 0 : index
    %99 = vector.load %arg12[%c0_41, %c0_42, %c0_43] : memref<1x1x64xf32, #tpu.memory_space<vmem>>, vector<1x1x64xf32>
    %100 = vector.shape_cast %99 : vector<1x1x64xf32> to vector<1x64xf32>
    %101 = vector.broadcast %100 : vector<1x64xf32> to vector<16x64xf32>
    %102 = arith.addf %98, %101 : vector<16x64xf32>
    %cst_44 = arith.constant 5.000000e-01 : f32
    %103 = vector.broadcast %cst_44 : f32 to vector<16x64xf32>
    %104 = arith.mulf %103, %102 : vector<16x64xf32>
    %cst_45 = arith.constant 4.471500e-02 : f32
    %105 = vector.broadcast %cst_45 : f32 to vector<16x64xf32>
    %106 = arith.mulf %105, %102 : vector<16x64xf32>
    %107 = arith.mulf %106, %102 : vector<16x64xf32>
    %108 = arith.mulf %107, %102 : vector<16x64xf32>
    %109 = arith.addf %102, %108 : vector<16x64xf32>
    %cst_46 = arith.constant 0.797884583 : f32
    %110 = vector.broadcast %cst_46 : f32 to vector<16x64xf32>
    %111 = arith.mulf %110, %109 : vector<16x64xf32>
    %112 = math.tanh %111 : vector<16x64xf32>
    %cst_47 = arith.constant 1.000000e+00 : f32
    %113 = vector.broadcast %cst_47 : f32 to vector<16x64xf32>
    %114 = arith.addf %113, %112 : vector<16x64xf32>
    %115 = arith.mulf %104, %114 : vector<16x64xf32>
    %116 = arith.truncf %115 : vector<16x64xf32> to vector<16x64xbf16>
    %c0_48 = arith.constant 0 : index
    %c0_49 = arith.constant 0 : index
    %c0_50 = arith.constant 0 : index
    %117 = vector.load %arg13[%c0_48, %c0_49, %c0_50] : memref<1x64x32xbf16, #tpu.memory_space<vmem>>, vector<1x64x32xbf16>
    %118 = vector.shape_cast %117 : vector<1x64x32xbf16> to vector<64x32xbf16>
    %cst_51 = arith.constant dense<0.000000e+00> : vector<16x32xf32>
    %119 = tpu.matmul %116, %118, %cst_51 {dimension_numbers = #tpu.dot_dimension_numbers<[1], [0], [0], [1], [0, 0, 1, 1], [], []>} : vector<16x64xbf16>, vector<64x32xbf16>, vector<16x32xf32> -> vector<16x32xf32>
    %c0_52 = arith.constant 0 : index
    %c0_53 = arith.constant 0 : index
    %c0_54 = arith.constant 0 : index
    %120 = vector.load %arg14[%c0_52, %c0_53, %c0_54] : memref<1x1x32xf32, #tpu.memory_space<vmem>>, vector<1x1x32xf32>
    %121 = vector.shape_cast %120 : vector<1x1x32xf32> to vector<1x32xf32>
    %122 = vector.broadcast %121 : vector<1x32xf32> to vector<16x32xf32>
    %123 = arith.addf %119, %122 : vector<16x32xf32>
    %124 = arith.addf %94, %123 : vector<16x32xf32>
    %c0_55 = arith.constant 0 : index
    %c0_56 = arith.constant 0 : index
    %c0_57 = arith.constant 0 : index
    %125 = vector.load %arg15[%c0_55, %c0_56, %c0_57] : memref<1x1x32xf32, #tpu.memory_space<vmem>>, vector<1x1x32xf32>
    %126 = vector.shape_cast %125 : vector<1x1x32xf32> to vector<1x32xf32>
    %c0_58 = arith.constant 0 : index
    %c0_59 = arith.constant 0 : index
    %c0_60 = arith.constant 0 : index
    %127 = vector.load %arg16[%c0_58, %c0_59, %c0_60] : memref<1x1x32xf32, #tpu.memory_space<vmem>>, vector<1x1x32xf32>
    %128 = vector.shape_cast %127 : vector<1x1x32xf32> to vector<1x32xf32>
    %cst_61 = arith.constant dense<0.000000e+00> : vector<16xf32>
    %129 = vector.multi_reduction <add>, %124, %cst_61 [1] : vector<16x32xf32> to vector<16xf32>
    %130 = vector.shape_cast %129 : vector<16xf32> to vector<16x1xf32>
    %cst_62 = arith.constant 3.200000e+01 : f32
    %131 = vector.broadcast %cst_62 : f32 to vector<16x1xf32>
    %132 = arith.divf %130, %131 : vector<16x1xf32>
    %133 = vector.broadcast %132 : vector<16x1xf32> to vector<16x32xf32>
    %134 = arith.subf %124, %133 : vector<16x32xf32>
    %135 = vector.broadcast %132 : vector<16x1xf32> to vector<16x32xf32>
    %136 = arith.subf %124, %135 : vector<16x32xf32>
    %137 = arith.mulf %134, %136 : vector<16x32xf32>
    %cst_63 = arith.constant dense<0.000000e+00> : vector<16xf32>
    %138 = vector.multi_reduction <add>, %137, %cst_63 [1] : vector<16x32xf32> to vector<16xf32>
    %139 = vector.shape_cast %138 : vector<16xf32> to vector<16x1xf32>
    %cst_64 = arith.constant 3.200000e+01 : f32
    %140 = vector.broadcast %cst_64 : f32 to vector<16x1xf32>
    %141 = arith.divf %139, %140 : vector<16x1xf32>
    %142 = vector.broadcast %132 : vector<16x1xf32> to vector<16x32xf32>
    %143 = arith.subf %124, %142 : vector<16x32xf32>
    %cst_65 = arith.constant 9.99999996E-13 : f32
    %144 = vector.broadcast %cst_65 : f32 to vector<16x1xf32>
    %145 = arith.addf %141, %144 : vector<16x1xf32>
    %146 = math.rsqrt %145 : vector<16x1xf32>
    %147 = vector.broadcast %146 : vector<16x1xf32> to vector<16x32xf32>
    %148 = arith.mulf %143, %147 : vector<16x32xf32>
    %149 = vector.broadcast %126 : vector<1x32xf32> to vector<16x32xf32>
    %150 = arith.mulf %148, %149 : vector<16x32xf32>
    %151 = vector.broadcast %128 : vector<1x32xf32> to vector<16x32xf32>
    %152 = arith.addf %150, %151 : vector<16x32xf32>
    %c0_66 = arith.constant 0 : index
    %c0_67 = arith.constant 0 : index
    %153 = vector.load %arg22[%c0_66, %c0_67] : memref<16x32xf32, #tpu.memory_space<vmem>>, vector<16x32xf32>
    tpu.vector_store %arg22[%c0_66, %c0_67], %152 {strides = array<i32>} : memref<16x32xf32, #tpu.memory_space<vmem>>, vector<16x32xf32>,
    %c1_i32 = arith.constant 1 : i32
    %154 = arith.cmpi eq, %arg0, %c1_i32 : i32
    %155 = arith.extui %154 : i1 to i32
    %c0_i32_68 = arith.constant 0 : i32
    %156 = arith.cmpi ne, %155, %c0_i32_68 : i32
    scf.if %156 {
      %c0_69 = arith.constant 0 : index
      %c0_70 = arith.constant 0 : index
      %157 = tpu.strided_load %arg22[%c0_69, %c0_70] {strides = array<i32: 8, 1>} : memref<16x32xf32, #tpu.memory_space<vmem>>, vector<2x32xf32>
      %158 = arith.truncf %157 : vector<2x32xf32> to vector<2x32xbf16>
      %c0_71 = arith.constant 0 : index
      %c0_72 = arith.constant 0 : index
      %159 = vector.load %arg17[%c0_71, %c0_72] : memref<32x32xbf16, #tpu.memory_space<vmem>>, vector<32x32xbf16>
      %cst_73 = arith.constant dense<0.000000e+00> : vector<2x32xf32>
      %160 = tpu.matmul %158, %159, %cst_73 {dimension_numbers = #tpu.dot_dimension_numbers<[1], [0], [0], [1], [0, 0, 1, 1], [], []>} : vector<2x32xbf16>, vector<32x32xbf16>, vector<2x32xf32> -> vector<2x32xf32>
      %c0_74 = arith.constant 0 : index
      %c0_75 = arith.constant 0 : index
      %161 = vector.load %arg18[%c0_74, %c0_75] : memref<1x32xf32, #tpu.memory_space<vmem>>, vector<1x32xf32>
      %162 = vector.broadcast %161 : vector<1x32xf32> to vector<2x32xf32>
      %163 = arith.addf %160, %162 : vector<2x32xf32>
      %164 = math.tanh %163 : vector<2x32xf32>
      %165 = arith.truncf %164 : vector<2x32xf32> to vector<2x32xbf16>
      %c0_76 = arith.constant 0 : index
      %c0_77 = arith.constant 0 : index
      %166 = vector.load %arg19[%c0_76, %c0_77] : memref<32x3xbf16, #tpu.memory_space<vmem>>, vector<32x3xbf16>
      %cst_78 = arith.constant dense<0.000000e+00> : vector<2x3xf32>
      %167 = tpu.matmul %165, %166, %cst_78 {dimension_numbers = #tpu.dot_dimension_numbers<[1], [0], [0], [1], [0, 0, 1, 1], [], []>} : vector<2x32xbf16>, vector<32x3xbf16>, vector<2x3xf32> -> vector<2x3xf32>
      %c0_79 = arith.constant 0 : index
      %c0_80 = arith.constant 0 : index
      %168 = vector.load %arg20[%c0_79, %c0_80] : memref<1x3xf32, #tpu.memory_space<vmem>>, vector<1x3xf32>
      %169 = vector.broadcast %168 : vector<1x3xf32> to vector<2x3xf32>
      %170 = arith.addf %167, %169 : vector<2x3xf32>
      %c0_81 = arith.constant 0 : index
      %c0_82 = arith.constant 0 : index
      %171 = vector.load %arg21[%c0_81, %c0_82] : memref<2x3xf32, #tpu.memory_space<vmem>>, vector<2x3xf32>
      tpu.vector_store %arg21[%c0_81, %c0_82], %170 {strides = array<i32>} : memref<2x3xf32, #tpu.memory_space<vmem>>, vector<2x3xf32>,
    } else {
    }
    return
  }
  func.func @transform_0(%arg0: i32) -> (i32, i32) {
    %c0_i32 = arith.constant 0 : i32
    %c0_i32_0 = arith.constant 0 : i32
    %c0_i32_1 = arith.constant 0 : i32
    return %c0_i32, %c0_i32_0 : i32, i32
  }
  func.func @transform_1(%arg0: i32) -> (i32, i32) {
    %c0_i32 = arith.constant 0 : i32
    %c0_i32_0 = arith.constant 0 : i32
    %c0_i32_1 = arith.constant 0 : i32
    return %c0_i32, %c0_i32_0 : i32, i32
  }
  func.func @transform_2(%arg0: i32) -> (i32, i32) {
    %c0_i32 = arith.constant 0 : i32
    %c0_i32_0 = arith.constant 0 : i32
    %c0_i32_1 = arith.constant 0 : i32
    return %c0_i32, %c0_i32_0 : i32, i32
  }
  func.func @transform_3(%arg0: i32) -> (i32, i32) {
    %c0_i32 = arith.constant 0 : i32
    %c0_i32_0 = arith.constant 0 : i32
    %c0_i32_1 = arith.constant 0 : i32
    return %c0_i32, %c0_i32_0 : i32, i32
  }
  func.func @transform_4(%arg0: i32) -> (i32, i32, i32) {
    %c0_i32 = arith.constant 0 : i32
    %c0_i32_0 = arith.constant 0 : i32
    %c0_i32_1 = arith.constant 0 : i32
    return %arg0, %c0_i32, %c0_i32_0 : i32, i32, i32
  }
  func.func @transform_5(%arg0: i32) -> (i32, i32, i32) {
    %c0_i32 = arith.constant 0 : i32
    %c0_i32_0 = arith.constant 0 : i32
    %c0_i32_1 = arith.constant 0 : i32
    return %arg0, %c0_i32, %c0_i32_0 : i32, i32, i32
  }
  func.func @transform_6(%arg0: i32) -> (i32, i32, i32) {
    %c0_i32 = arith.constant 0 : i32
    %c0_i32_0 = arith.constant 0 : i32
    %c0_i32_1 = arith.constant 0 : i32
    return %arg0, %c0_i32, %c0_i32_0 : i32, i32, i32
  }
  func.func @transform_7(%arg0: i32) -> (i32, i32, i32) {
    %c0_i32 = arith.constant 0 : i32
    %c0_i32_0 = arith.constant 0 : i32
    %c0_i32_1 = arith.constant 0 : i32
    return %arg0, %c0_i32, %c0_i32_0 : i32, i32, i32
  }
  func.func @transform_8(%arg0: i32) -> (i32, i32, i32) {
    %c0_i32 = arith.constant 0 : i32
    %c0_i32_0 = arith.constant 0 : i32
    %c0_i32_1 = arith.constant 0 : i32
    return %arg0, %c0_i32, %c0_i32_0 : i32, i32, i32
  }
  func.func @transform_9(%arg0: i32) -> (i32, i32, i32) {
    %c0_i32 = arith.constant 0 : i32
    %c0_i32_0 = arith.constant 0 : i32
    %c0_i32_1 = arith.constant 0 : i32
    return %arg0, %c0_i32, %c0_i32_0 : i32, i32, i32
  }
  func.func @transform_10(%arg0: i32) -> (i32, i32, i32) {
    %c0_i32 = arith.constant 0 : i32
    %c0_i32_0 = arith.constant 0 : i32
    %c0_i32_1 = arith.constant 0 : i32
    return %arg0, %c0_i32, %c0_i32_0 : i32, i32, i32
  }
  func.func @transform_11(%arg0: i32) -> (i32, i32, i32) {
    %c0_i32 = arith.constant 0 : i32
    %c0_i32_0 = arith.constant 0 : i32
    %c0_i32_1 = arith.constant 0 : i32
    return %arg0, %c0_i32, %c0_i32_0 : i32, i32, i32
  }
  func.func @transform_12(%arg0: i32) -> (i32, i32, i32) {
    %c0_i32 = arith.constant 0 : i32
    %c0_i32_0 = arith.constant 0 : i32
    %c0_i32_1 = arith.constant 0 : i32
    return %arg0, %c0_i32, %c0_i32_0 : i32, i32, i32
  }
  func.func @transform_13(%arg0: i32) -> (i32, i32, i32) {
    %c0_i32 = arith.constant 0 : i32
    %c0_i32_0 = arith.constant 0 : i32
    %c0_i32_1 = arith.constant 0 : i32
    return %arg0, %c0_i32, %c0_i32_0 : i32, i32, i32
  }
  func.func @transform_14(%arg0: i32) -> (i32, i32, i32) {
    %c0_i32 = arith.constant 0 : i32
    %c0_i32_0 = arith.constant 0 : i32
    %c0_i32_1 = arith.constant 0 : i32
    return %arg0, %c0_i32, %c0_i32_0 : i32, i32, i32
  }
  func.func @transform_15(%arg0: i32) -> (i32, i32, i32) {
    %c0_i32 = arith.constant 0 : i32
    %c0_i32_0 = arith.constant 0 : i32
    %c0_i32_1 = arith.constant 0 : i32
    return %arg0, %c0_i32, %c0_i32_0 : i32, i32, i32
  }
  func.func @transform_16(%arg0: i32) -> (i32, i32) {
    %c0_i32 = arith.constant 0 : i32
    %c0_i32_0 = arith.constant 0 : i32
    %c0_i32_1 = arith.constant 0 : i32
    return %c0_i32, %c0_i32_0 : i32, i32
  }
  func.func @transform_17(%arg0: i32) -> (i32, i32) {
    %c0_i32 = arith.constant 0 : i32
    %c0_i32_0 = arith.constant 0 : i32
    %c0_i32_1 = arith.constant 0 : i32
    return %c0_i32, %c0_i32_0 : i32, i32
  }
  func.func @transform_18(%arg0: i32) -> (i32, i32) {
    %c0_i32 = arith.constant 0 : i32
    %c0_i32_0 = arith.constant 0 : i32
    %c0_i32_1 = arith.constant 0 : i32
    return %c0_i32, %c0_i32_0 : i32, i32
  }
  func.func @transform_19(%arg0: i32) -> (i32, i32) {
    %c0_i32 = arith.constant 0 : i32
    %c0_i32_0 = arith.constant 0 : i32
    %c0_i32_1 = arith.constant 0 : i32
    return %c0_i32, %c0_i32_0 : i32, i32
  }
  func.func @transform_20(%arg0: i32) -> (i32, i32) {
    %c0_i32 = arith.constant 0 : i32
    %c0_i32_0 = arith.constant 0 : i32
    %c0_i32_1 = arith.constant 0 : i32
    return %c0_i32, %c0_i32_0 : i32, i32
  }
}

</mosaic_0001>

<llo_original>
// kernel: mul.22
$region0: #{mul.22}
  %s0 = inlined_call_operand.vmem [shape: f32[2,8], index: 0, kind: input, shape index: {}]
  %s1 = inlined_call_operand.vmem [shape: f32[16], index: 1, kind: output, shape index: {}]
  $region1: #{mul.22} parent=0
    #allocation0 [shape = 'u8[4096]{0}', space=vmem, size = 0x1000, scoped, tag = 'scoped mem for output reshape']
    #allocation1 [shape = 'u8[4096]{0}', space=vmem, size = 0x1000, scoped, tag = 'scoped mem for input reshape']
    %s3 = sshllo.u32 0, 2
    %v4 = vld [vmem:[%s0] sm:%s3]
    %5 = vst [vmem:[#allocation1] sm:%s3] %v4
    %v6 = vld [vmem:[#allocation1] sm:$0x1]
    %vm7 = vcmask 64512
    %8 = vst.msk [vmem:[#allocation0] sm:$0x1] %vm7, %v6
    %s9 = scalar_lea.vmem [#allocation1], 1
    %v10 = vld [vmem:[%s9] sm:$0x1]
    %11 = vrot.lane.b32.xlu0 %v10, 8
    %v12 = vpop.permute.xlu0 %11
    %vm13 = vcmask 130112
    %14 = vst.msk [vmem:[#allocation0] sm:$0x1] %vm13, %v12
    %s16 = sshllo.u32 0, 1
    %v18 = vld [vmem:[#allocation0] sm:%s16]
    %s19 = sshllo.u32 0, 1
    %20 = vst [vmem:[%s1] sm:%s19] %v18

// kernel: bert_class_forward.1
$region0: #{bert_class_forward.1}
  #allocation0 [shape = 'u32[]', space=smem, size = 0x4, offset = 0x4, fixed_abs, tag = 'smem constant byte address 0x4 - core index']
  #allocation1 [shape = 'u32[144,128]{1,0:T(1,128)}', space=vmem, size = 0x12000, scoped, tag = 'internal scratch']
  #allocation2 [shape = 'f32[16,32]{1,0:T(8,128)}', space=vmem, size = 0x2000, scoped, tag = 'scratch operand']
  %s0 = inlined_call_operand.vmem [shape: f32[16,32], index: 0, kind: input, shape index: {}]
  %s1 = inlined_call_operand.vmem [shape: f32[16,16], index: 1, kind: input, shape index: {}]
  %s2 = inlined_call_operand.vmem [shape: f32[1,32], index: 2, kind: input, shape index: {}]
  %s3 = inlined_call_operand.vmem [shape: f32[1,32], index: 3, kind: input, shape index: {}]
  %s4 = inlined_call_operand.vmem [shape: bf16[2,32,96], index: 4, kind: input, shape index: {}]
  %s5 = inlined_call_operand.vmem [shape: f32[2,1,96], index: 5, kind: input, shape index: {}]
  %s6 = inlined_call_operand.vmem [shape: bf16[2,32,32], index: 6, kind: input, shape index: {}]
  %s7 = inlined_call_operand.vmem [shape: f32[2,1,32], index: 7, kind: input, shape index: {}]
  %s8 = inlined_call_operand.vmem [shape: f32[2,1,32], index: 8, kind: input, shape index: {}]
  %s9 = inlined_call_operand.vmem [shape: f32[2,1,32], index: 9, kind: input, shape index: {}]
  %s10 = inlined_call_operand.vmem [shape: bf16[2,32,64], index: 10, kind: input, shape index: {}]
  %s11 = inlined_call_operand.vmem [shape: f32[2,1,64], index: 11, kind: input, shape index: {}]
  %s12 = inlined_call_operand.vmem [shape: bf16[2,64,32], index: 12, kind: input, shape index: {}]
  %s13 = inlined_call_operand.vmem [shape: f32[2,1,32], index: 13, kind: input, shape index: {}]
  %s14 = inlined_call_operand.vmem [shape: f32[2,1,32], index: 14, kind: input, shape index: {}]
  %s15 = inlined_call_operand.vmem [shape: f32[2,1,32], index: 15, kind: input, shape index: {}]
  %s16 = inlined_call_operand.vmem [shape: bf16[32,32], index: 16, kind: input, shape index: {}]
  %s17 = inlined_call_operand.vmem [shape: f32[1,32], index: 17, kind: input, shape index: {}]
  %s18 = inlined_call_operand.vmem [shape: bf16[32,3], index: 18, kind: input, shape index: {}]
  %s19 = inlined_call_operand.vmem [shape: f32[1,3], index: 19, kind: input, shape index: {}]
  %s20 = inlined_call_operand.hbm [shape: f32[2,3], index: 20, kind: output, shape index: {}]
  %s21 = sld [smem:[#allocation0]]
  $region121: #{bert_class_forward.1} parent=0
    _
  %s23 = ssub.s32 1, %s21
  %s24 = scalar_select 0, %s23, %s21
  $region1: #{bert_class_forward.1} parent=0
    #allocation3 [shape = 'u8[1024]{0}', space=vmem, size = 0x400, scoped, tag = 'output window, operand 0, single buffered']
    #allocation4 [shape = 's32[2]{0}', space=sflag, size = 0x8, scoped, tag = 'scoped memory for bert_class_forward.1']
    %25 = vsyncpa [#allocation4], 0
    loop: start=0, step=1, limit=4
    $region2: #{bert_class_forward.1} parent=1 // loop_pre_header
      _
    $region3: #{bert_class_forward.1} parent=1 // loop_header
      %s27 = sphi 0, %s31
      %p28 = scmp.ge.s32.totalorder %s27, 4
      %s35 = sphi 0, %s35
      %s37 = sphi 0, %s35
      %s38 = sphi 0, %s37
      %s52 = sphi 0, %s38
      %s56 = sphi 0, %s56
      %s58 = sphi 0, %s56
      %s59 = sphi 0, %s58
      %s73 = sphi 0, %s59
      %s77 = sphi 0, %s77
      %s79 = sphi 0, %s77
      %s80 = sphi 0, %s79
      %s94 = sphi 0, %s80
      %s98 = sphi 0, %s98
      %s100 = sphi 0, %s98
      %s101 = sphi 0, %s100
      %s115 = sphi 0, %s101
      %s121 = sphi 0, %s123
      %s124 = sphi 0, %s121
      %s125 = sphi 0, %s124
      %s141 = sphi 0, %s125
      %s147 = sphi 0, %s149
      %s150 = sphi 0, %s147
      %s151 = sphi 0, %s150
      %s167 = sphi 0, %s151
      %s173 = sphi 0, %s175
      %s176 = sphi 0, %s173
      %s177 = sphi 0, %s176
      %s193 = sphi 0, %s177
      %s199 = sphi 0, %s201
      %s202 = sphi 0, %s199
      %s203 = sphi 0, %s202
      %s219 = sphi 0, %s203
      %s225 = sphi 0, %s227
      %s228 = sphi 0, %s225
      %s229 = sphi 0, %s228
      %s245 = sphi 0, %s229
      %s251 = sphi 0, %s253
      %s254 = sphi 0, %s251
      %s255 = sphi 0, %s254
      %s271 = sphi 0, %s255
      %s277 = sphi 0, %s279
      %s280 = sphi 0, %s277
      %s281 = sphi 0, %s280
      %s297 = sphi 0, %s281
      %s303 = sphi 0, %s305
      %s306 = sphi 0, %s303
      %s307 = sphi 0, %s306
      %s323 = sphi 0, %s307
      %s329 = sphi 0, %s331
      %s332 = sphi 0, %s329
      %s333 = sphi 0, %s332
      %s349 = sphi 0, %s333
      %s355 = sphi 0, %s357
      %s358 = sphi 0, %s355
      %s359 = sphi 0, %s358
      %s375 = sphi 0, %s359
      %s381 = sphi 0, %s383
      %s384 = sphi 0, %s381
      %s385 = sphi 0, %s384
      %s401 = sphi 0, %s385
      %s407 = sphi 0, %s409
      %s410 = sphi 0, %s407
      %s411 = sphi 0, %s410
      %s427 = sphi 0, %s411
      %s431 = sphi 0, %s431
      %s433 = sphi 0, %s431
      %s434 = sphi 0, %s433
      %s448 = sphi 0, %s434
      %s452 = sphi 0, %s452
      %s454 = sphi 0, %s452
      %s455 = sphi 0, %s454
      %s469 = sphi 0, %s455
      %s473 = sphi 0, %s473
      %s475 = sphi 0, %s473
      %s476 = sphi 0, %s475
      %s490 = sphi 0, %s476
      %s494 = sphi 0, %s494
      %s496 = sphi 0, %s494
      %s497 = sphi 0, %s496
      %s511 = sphi 0, %s497
      %s515 = sphi 0, %s515
      %s517 = sphi 0, %s515
      %s518 = sphi 0, %s517
      %s532 = sphi 0, %s518
    $region4: #{bert_class_forward.1} parent=1 // loop_header_branch
      %30 = sbr.rel (%p28) target = $region8
    $region5: #{bert_class_forward.1} parent=1 // loop_body
      %s32 = ssub.s32 %s27, 1
      %s33 = ssub.s32 %s27, 2
      %s34 = sadd.s32 %s27, 1
      %s36 = sadd.s32 %s35, 1
      %p39 = scmp.eq.s32.totalorder %s27, 1
      %p40 = scmp.ne.s32.totalorder %s35, %s37
      %p41 = scmp.eq.s32.totalorder %s27, 0
      %p42 = por %p40, %p41
      %p43 = scmp.ne.s32.totalorder %s35, %s37
      %p44 = scmp.eq.s32.totalorder %s32, 1
      %p45 = por %p43, %p44
      %p46 = scmp.ne.s32.totalorder %s37, %s38
      %p47 = scmp.eq.s32.totalorder %s32, 0
      %p48 = por %p46, %p47
      %p49 = scmp.ne.s32.totalorder %s37, %s38
      %p50 = scmp.eq.s32.totalorder %s33, 1
      %p51 = por %p49, %p50
      %p53 = scmp.ne.s32.totalorder %s38, %s52
      %p54 = scmp.eq.s32.totalorder %s33, 0
      %p55 = por %p53, %p54
      %s57 = sadd.s32 %s56, 1
      %p60 = scmp.eq.s32.totalorder %s27, 1
      %p61 = scmp.ne.s32.totalorder %s56, %s58
      %p62 = scmp.eq.s32.totalorder %s27, 0
      %p63 = por %p61, %p62
      %p64 = scmp.ne.s32.totalorder %s56, %s58
      %p65 = scmp.eq.s32.totalorder %s32, 1
      %p66 = por %p64, %p65
      %p67 = scmp.ne.s32.totalorder %s58, %s59
      %p68 = scmp.eq.s32.totalorder %s32, 0
      %p69 = por %p67, %p68
      %p70 = scmp.ne.s32.totalorder %s58, %s59
      %p71 = scmp.eq.s32.totalorder %s33, 1
      %p72 = por %p70, %p71
      %p74 = scmp.ne.s32.totalorder %s59, %s73
      %p75 = scmp.eq.s32.totalorder %s33, 0
      %p76 = por %p74, %p75
      %s78 = sadd.s32 %s77, 1
      %p81 = scmp.eq.s32.totalorder %s27, 1
      %p82 = scmp.ne.s32.totalorder %s77, %s79
      %p83 = scmp.eq.s32.totalorder %s27, 0
      %p84 = por %p82, %p83
      %p85 = scmp.ne.s32.totalorder %s77, %s79
      %p86 = scmp.eq.s32.totalorder %s32, 1
      %p87 = por %p85, %p86
      %p88 = scmp.ne.s32.totalorder %s79, %s80
      %p89 = scmp.eq.s32.totalorder %s32, 0
      %p90 = por %p88, %p89
      %p91 = scmp.ne.s32.totalorder %s79, %s80
      %p92 = scmp.eq.s32.totalorder %s33, 1
      %p93 = por %p91, %p92
      %p95 = scmp.ne.s32.totalorder %s80, %s94
      %p96 = scmp.eq.s32.totalorder %s33, 0
      %p97 = por %p95, %p96
      %s99 = sadd.s32 %s98, 1
      %p102 = scmp.eq.s32.totalorder %s27, 1
      %p103 = scmp.ne.s32.totalorder %s98, %s100
      %p104 = scmp.eq.s32.totalorder %s27, 0
      %p105 = por %p103, %p104
      %p106 = scmp.ne.s32.totalorder %s98, %s100
      %p107 = scmp.eq.s32.totalorder %s32, 1
      %p108 = por %p106, %p107
      %p109 = scmp.ne.s32.totalorder %s100, %s101
      %p110 = scmp.eq.s32.totalorder %s32, 0
      %p111 = por %p109, %p110
      %p112 = scmp.ne.s32.totalorder %s100, %s101
      %p113 = scmp.eq.s32.totalorder %s33, 1
      %p114 = por %p112, %p113
      %p116 = scmp.ne.s32.totalorder %s101, %s115
      %p117 = scmp.eq.s32.totalorder %s33, 0
      %p118 = por %p116, %p117
      %s119 = ssub.s32 %s27, %s34
      %p120 = scmp.eq.s32.totalorder %s119, 0
      %s122 = sadd.s32 %s121, 1
      %s123 = scalar_select %p120, %s121, %s122
      %p126 = pneg %p120
      %p127 = scmp.eq.s32.totalorder %s27, 1
      %p128 = por %p126, %p127
      %p129 = scmp.ne.s32.totalorder %s121, %s124
      %p130 = scmp.eq.s32.totalorder %s27, 0
      %p131 = por %p129, %p130
      %p132 = scmp.ne.s32.totalorder %s121, %s124
      %p133 = scmp.eq.s32.totalorder %s32, 1
      %p134 = por %p132, %p133
      %p135 = scmp.ne.s32.totalorder %s124, %s125
      %p136 = scmp.eq.s32.totalorder %s32, 0
      %p137 = por %p135, %p136
      %p138 = scmp.ne.s32.totalorder %s124, %s125
      %p139 = scmp.eq.s32.totalorder %s33, 1
      %p140 = por %p138, %p139
      %p142 = scmp.ne.s32.totalorder %s125, %s141
      %p143 = scmp.eq.s32.totalorder %s33, 0
      %p144 = por %p142, %p143
      %s145 = ssub.s32 %s27, %s34
      %p146 = scmp.eq.s32.totalorder %s145, 0
      %s148 = sadd.s32 %s147, 1
      %s149 = scalar_select %p146, %s147, %s148
      %p152 = pneg %p146
      %p153 = scmp.eq.s32.totalorder %s27, 1
      %p154 = por %p152, %p153
      %p155 = scmp.ne.s32.totalorder %s147, %s150
      %p156 = scmp.eq.s32.totalorder %s27, 0
      %p157 = por %p155, %p156
      %p158 = scmp.ne.s32.totalorder %s147, %s150
      %p159 = scmp.eq.s32.totalorder %s32, 1
      %p160 = por %p158, %p159
      %p161 = scmp.ne.s32.totalorder %s150, %s151
      %p162 = scmp.eq.s32.totalorder %s32, 0
      %p163 = por %p161, %p162
      %p164 = scmp.ne.s32.totalorder %s150, %s151
      %p165 = scmp.eq.s32.totalorder %s33, 1
      %p166 = por %p164, %p165
      %p168 = scmp.ne.s32.totalorder %s151, %s167
      %p169 = scmp.eq.s32.totalorder %s33, 0
      %p170 = por %p168, %p169
      %s171 = ssub.s32 %s27, %s34
      %p172 = scmp.eq.s32.totalorder %s171, 0
      %s174 = sadd.s32 %s173, 1
      %s175 = scalar_select %p172, %s173, %s174
      %p178 = pneg %p172
      %p179 = scmp.eq.s32.totalorder %s27, 1
      %p180 = por %p178, %p179
      %p181 = scmp.ne.s32.totalorder %s173, %s176
      %p182 = scmp.eq.s32.totalorder %s27, 0
      %p183 = por %p181, %p182
      %p184 = scmp.ne.s32.totalorder %s173, %s176
      %p185 = scmp.eq.s32.totalorder %s32, 1
      %p186 = por %p184, %p185
      %p187 = scmp.ne.s32.totalorder %s176, %s177
      %p188 = scmp.eq.s32.totalorder %s32, 0
      %p189 = por %p187, %p188
      %p190 = scmp.ne.s32.totalorder %s176, %s177
      %p191 = scmp.eq.s32.totalorder %s33, 1
      %p192 = por %p190, %p191
      %p194 = scmp.ne.s32.totalorder %s177, %s193
      %p195 = scmp.eq.s32.totalorder %s33, 0
      %p196 = por %p194, %p195
      %s197 = ssub.s32 %s27, %s34
      %p198 = scmp.eq.s32.totalorder %s197, 0
      %s200 = sadd.s32 %s199, 1
      %s201 = scalar_select %p198, %s199, %s200
      %p204 = pneg %p198
      %p205 = scmp.eq.s32.totalorder %s27, 1
      %p206 = por %p204, %p205
      %p207 = scmp.ne.s32.totalorder %s199, %s202
      %p208 = scmp.eq.s32.totalorder %s27, 0
      %p209 = por %p207, %p208
      %p210 = scmp.ne.s32.totalorder %s199, %s202
      %p211 = scmp.eq.s32.totalorder %s32, 1
      %p212 = por %p210, %p211
      %p213 = scmp.ne.s32.totalorder %s202, %s203
      %p214 = scmp.eq.s32.totalorder %s32, 0
      %p215 = por %p213, %p214
      %p216 = scmp.ne.s32.totalorder %s202, %s203
      %p217 = scmp.eq.s32.totalorder %s33, 1
      %p218 = por %p216, %p217
      %p220 = scmp.ne.s32.totalorder %s203, %s219
      %p221 = scmp.eq.s32.totalorder %s33, 0
      %p222 = por %p220, %p221
      %s223 = ssub.s32 %s27, %s34
      %p224 = scmp.eq.s32.totalorder %s223, 0
      %s226 = sadd.s32 %s225, 1
      %s227 = scalar_select %p224, %s225, %s226
      %p230 = pneg %p224
      %p231 = scmp.eq.s32.totalorder %s27, 1
      %p232 = por %p230, %p231
      %p233 = scmp.ne.s32.totalorder %s225, %s228
      %p234 = scmp.eq.s32.totalorder %s27, 0
      %p235 = por %p233, %p234
      %p236 = scmp.ne.s32.totalorder %s225, %s228
      %p237 = scmp.eq.s32.totalorder %s32, 1
      %p238 = por %p236, %p237
      %p239 = scmp.ne.s32.totalorder %s228, %s229
      %p240 = scmp.eq.s32.totalorder %s32, 0
      %p241 = por %p239, %p240
      %p242 = scmp.ne.s32.totalorder %s228, %s229
      %p243 = scmp.eq.s32.totalorder %s33, 1
      %p244 = por %p242, %p243
      %p246 = scmp.ne.s32.totalorder %s229, %s245
      %p247 = scmp.eq.s32.totalorder %s33, 0
      %p248 = por %p246, %p247
      %s249 = ssub.s32 %s27, %s34
      %p250 = scmp.eq.s32.totalorder %s249, 0
      %s252 = sadd.s32 %s251, 1
      %s253 = scalar_select %p250, %s251, %s252
      %p256 = pneg %p250
      %p257 = scmp.eq.s32.totalorder %s27, 1
      %p258 = por %p256, %p257
      %p259 = scmp.ne.s32.totalorder %s251, %s254
      %p260 = scmp.eq.s32.totalorder %s27, 0
      %p261 = por %p259, %p260
      %p262 = scmp.ne.s32.totalorder %s251, %s254
      %p263 = scmp.eq.s32.totalorder %s32, 1
      %p264 = por %p262, %p263
      %p265 = scmp.ne.s32.totalorder %s254, %s255
      %p266 = scmp.eq.s32.totalorder %s32, 0
      %p267 = por %p265, %p266
      %p268 = scmp.ne.s32.totalorder %s254, %s255
      %p269 = scmp.eq.s32.totalorder %s33, 1
      %p270 = por %p268, %p269
      %p272 = scmp.ne.s32.totalorder %s255, %s271
      %p273 = scmp.eq.s32.totalorder %s33, 0
      %p274 = por %p272, %p273
      %s275 = ssub.s32 %s27, %s34
      %p276 = scmp.eq.s32.totalorder %s275, 0
      %s278 = sadd.s32 %s277, 1
      %s279 = scalar_select %p276, %s277, %s278
      %p282 = pneg %p276
      %p283 = scmp.eq.s32.totalorder %s27, 1
      %p284 = por %p282, %p283
      %p285 = scmp.ne.s32.totalorder %s277, %s280
      %p286 = scmp.eq.s32.totalorder %s27, 0
      %p287 = por %p285, %p286
      %p288 = scmp.ne.s32.totalorder %s277, %s280
      %p289 = scmp.eq.s32.totalorder %s32, 1
      %p290 = por %p288, %p289
      %p291 = scmp.ne.s32.totalorder %s280, %s281
      %p292 = scmp.eq.s32.totalorder %s32, 0
      %p293 = por %p291, %p292
      %p294 = scmp.ne.s32.totalorder %s280, %s281
      %p295 = scmp.eq.s32.totalorder %s33, 1
      %p296 = por %p294, %p295
      %p298 = scmp.ne.s32.totalorder %s281, %s297
      %p299 = scmp.eq.s32.totalorder %s33, 0
      %p300 = por %p298, %p299
      %s301 = ssub.s32 %s27, %s34
      %p302 = scmp.eq.s32.totalorder %s301, 0
      %s304 = sadd.s32 %s303, 1
      %s305 = scalar_select %p302, %s303, %s304
      %p308 = pneg %p302
      %p309 = scmp.eq.s32.totalorder %s27, 1
      %p310 = por %p308, %p309
      %p311 = scmp.ne.s32.totalorder %s303, %s306
      %p312 = scmp.eq.s32.totalorder %s27, 0
      %p313 = por %p311, %p312
      %p314 = scmp.ne.s32.totalorder %s303, %s306
      %p315 = scmp.eq.s32.totalorder %s32, 1
      %p316 = por %p314, %p315
      %p317 = scmp.ne.s32.totalorder %s306, %s307
      %p318 = scmp.eq.s32.totalorder %s32, 0
      %p319 = por %p317, %p318
      %p320 = scmp.ne.s32.totalorder %s306, %s307
      %p321 = scmp.eq.s32.totalorder %s33, 1
      %p322 = por %p320, %p321
      %p324 = scmp.ne.s32.totalorder %s307, %s323
      %p325 = scmp.eq.s32.totalorder %s33, 0
      %p326 = por %p324, %p325
      %s327 = ssub.s32 %s27, %s34
      %p328 = scmp.eq.s32.totalorder %s327, 0
      %s330 = sadd.s32 %s329, 1
      %s331 = scalar_select %p328, %s329, %s330
      %p334 = pneg %p328
      %p335 = scmp.eq.s32.totalorder %s27, 1
      %p336 = por %p334, %p335
      %p337 = scmp.ne.s32.totalorder %s329, %s332
      %p338 = scmp.eq.s32.totalorder %s27, 0
      %p339 = por %p337, %p338
      %p340 = scmp.ne.s32.totalorder %s329, %s332
      %p341 = scmp.eq.s32.totalorder %s32, 1
      %p342 = por %p340, %p341
      %p343 = scmp.ne.s32.totalorder %s332, %s333
      %p344 = scmp.eq.s32.totalorder %s32, 0
      %p345 = por %p343, %p344
      %p346 = scmp.ne.s32.totalorder %s332, %s333
      %p347 = scmp.eq.s32.totalorder %s33, 1
      %p348 = por %p346, %p347
      %p350 = scmp.ne.s32.totalorder %s333, %s349
      %p351 = scmp.eq.s32.totalorder %s33, 0
      %p352 = por %p350, %p351
      %s353 = ssub.s32 %s27, %s34
      %p354 = scmp.eq.s32.totalorder %s353, 0
      %s356 = sadd.s32 %s355, 1
      %s357 = scalar_select %p354, %s355, %s356
      %p360 = pneg %p354
      %p361 = scmp.eq.s32.totalorder %s27, 1
      %p362 = por %p360, %p361
      %p363 = scmp.ne.s32.totalorder %s355, %s358
      %p364 = scmp.eq.s32.totalorder %s27, 0
      %p365 = por %p363, %p364
      %p366 = scmp.ne.s32.totalorder %s355, %s358
      %p367 = scmp.eq.s32.totalorder %s32, 1
      %p368 = por %p366, %p367
      %p369 = scmp.ne.s32.totalorder %s358, %s359
      %p370 = scmp.eq.s32.totalorder %s32, 0
      %p371 = por %p369, %p370
      %p372 = scmp.ne.s32.totalorder %s358, %s359
      %p373 = scmp.eq.s32.totalorder %s33, 1
      %p374 = por %p372, %p373
      %p376 = scmp.ne.s32.totalorder %s359, %s375
      %p377 = scmp.eq.s32.totalorder %s33, 0
      %p378 = por %p376, %p377
      %s379 = ssub.s32 %s27, %s34
      %p380 = scmp.eq.s32.totalorder %s379, 0
      %s382 = sadd.s32 %s381, 1
      %s383 = scalar_select %p380, %s381, %s382
      %p386 = pneg %p380
      %p387 = scmp.eq.s32.totalorder %s27, 1
      %p388 = por %p386, %p387
      %p389 = scmp.ne.s32.totalorder %s381, %s384
      %p390 = scmp.eq.s32.totalorder %s27, 0
      %p391 = por %p389, %p390
      %p392 = scmp.ne.s32.totalorder %s381, %s384
      %p393 = scmp.eq.s32.totalorder %s32, 1
      %p394 = por %p392, %p393
      %p395 = scmp.ne.s32.totalorder %s384, %s385
      %p396 = scmp.eq.s32.totalorder %s32, 0
      %p397 = por %p395, %p396
      %p398 = scmp.ne.s32.totalorder %s384, %s385
      %p399 = scmp.eq.s32.totalorder %s33, 1
      %p400 = por %p398, %p399
      %p402 = scmp.ne.s32.totalorder %s385, %s401
      %p403 = scmp.eq.s32.totalorder %s33, 0
      %p404 = por %p402, %p403
      %s405 = ssub.s32 %s27, %s34
      %p406 = scmp.eq.s32.totalorder %s405, 0
      %s408 = sadd.s32 %s407, 1
      %s409 = scalar_select %p406, %s407, %s408
      %p412 = pneg %p406
      %p413 = scmp.eq.s32.totalorder %s27, 1
      %p414 = por %p412, %p413
      %p415 = scmp.ne.s32.totalorder %s407, %s410
      %p416 = scmp.eq.s32.totalorder %s27, 0
      %p417 = por %p415, %p416
      %p418 = scmp.ne.s32.totalorder %s407, %s410
      %p419 = scmp.eq.s32.totalorder %s32, 1
      %p420 = por %p418, %p419
      %p421 = scmp.ne.s32.totalorder %s410, %s411
      %p422 = scmp.eq.s32.totalorder %s32, 0
      %p423 = por %p421, %p422
      %p424 = scmp.ne.s32.totalorder %s410, %s411
      %p425 = scmp.eq.s32.totalorder %s33, 1
      %p426 = por %p424, %p425
      %p428 = scmp.ne.s32.totalorder %s411, %s427
      %p429 = scmp.eq.s32.totalorder %s33, 0
      %p430 = por %p428, %p429
      %s432 = sadd.s32 %s431, 1
      %p435 = scmp.eq.s32.totalorder %s27, 1
      %p436 = scmp.ne.s32.totalorder %s431, %s433
      %p437 = scmp.eq.s32.totalorder %s27, 0
      %p438 = por %p436, %p437
      %p439 = scmp.ne.s32.totalorder %s431, %s433
      %p440 = scmp.eq.s32.totalorder %s32, 1
      %p441 = por %p439, %p440
      %p442 = scmp.ne.s32.totalorder %s433, %s434
      %p443 = scmp.eq.s32.totalorder %s32, 0
      %p444 = por %p442, %p443
      %p445 = scmp.ne.s32.totalorder %s433, %s434
      %p446 = scmp.eq.s32.totalorder %s33, 1
      %p447 = por %p445, %p446
      %p449 = scmp.ne.s32.totalorder %s434, %s448
      %p450 = scmp.eq.s32.totalorder %s33, 0
      %p451 = por %p449, %p450
      %s453 = sadd.s32 %s452, 1
      %p456 = scmp.eq.s32.totalorder %s27, 1
      %p457 = scmp.ne.s32.totalorder %s452, %s454
      %p458 = scmp.eq.s32.totalorder %s27, 0
      %p459 = por %p457, %p458
      %p460 = scmp.ne.s32.totalorder %s452, %s454
      %p461 = scmp.eq.s32.totalorder %s32, 1
      %p462 = por %p460, %p461
      %p463 = scmp.ne.s32.totalorder %s454, %s455
      %p464 = scmp.eq.s32.totalorder %s32, 0
      %p465 = por %p463, %p464
      %p466 = scmp.ne.s32.totalorder %s454, %s455
      %p467 = scmp.eq.s32.totalorder %s33, 1
      %p468 = por %p466, %p467
      %p470 = scmp.ne.s32.totalorder %s455, %s469
      %p471 = scmp.eq.s32.totalorder %s33, 0
      %p472 = por %p470, %p471
      %s474 = sadd.s32 %s473, 1
      %p477 = scmp.eq.s32.totalorder %s27, 1
      %p478 = scmp.ne.s32.totalorder %s473, %s475
      %p479 = scmp.eq.s32.totalorder %s27, 0
      %p480 = por %p478, %p479
      %p481 = scmp.ne.s32.totalorder %s473, %s475
      %p482 = scmp.eq.s32.totalorder %s32, 1
      %p483 = por %p481, %p482
      %p484 = scmp.ne.s32.totalorder %s475, %s476
      %p485 = scmp.eq.s32.totalorder %s32, 0
      %p486 = por %p484, %p485
      %p487 = scmp.ne.s32.totalorder %s475, %s476
      %p488 = scmp.eq.s32.totalorder %s33, 1
      %p489 = por %p487, %p488
      %p491 = scmp.ne.s32.totalorder %s476, %s490
      %p492 = scmp.eq.s32.totalorder %s33, 0
      %p493 = por %p491, %p492
      %s495 = sadd.s32 %s494, 1
      %p498 = scmp.eq.s32.totalorder %s27, 1
      %p499 = scmp.ne.s32.totalorder %s494, %s496
      %p500 = scmp.eq.s32.totalorder %s27, 0
      %p501 = por %p499, %p500
      %p502 = scmp.ne.s32.totalorder %s494, %s496
      %p503 = scmp.eq.s32.totalorder %s32, 1
      %p504 = por %p502, %p503
      %p505 = scmp.ne.s32.totalorder %s496, %s497
      %p506 = scmp.eq.s32.totalorder %s32, 0
      %p507 = por %p505, %p506
      %p508 = scmp.ne.s32.totalorder %s496, %s497
      %p509 = scmp.eq.s32.totalorder %s33, 1
      %p510 = por %p508, %p509
      %p512 = scmp.ne.s32.totalorder %s497, %s511
      %p513 = scmp.eq.s32.totalorder %s33, 0
      %p514 = por %p512, %p513
      %s516 = sadd.s32 %s515, 1
      %p519 = scmp.eq.s32.totalorder %s27, 1
      %p520 = scmp.ne.s32.totalorder %s515, %s517
      %p521 = scmp.eq.s32.totalorder %s27, 0
      %p522 = por %p520, %p521
      %p523 = scmp.ne.s32.totalorder %s515, %s517
      %p524 = scmp.eq.s32.totalorder %s32, 1
      %p525 = por %p523, %p524
      %p526 = scmp.ne.s32.totalorder %s517, %s518
      %p527 = scmp.eq.s32.totalorder %s32, 0
      %p528 = por %p526, %p527
      %p529 = scmp.ne.s32.totalorder %s517, %s518
      %p530 = scmp.eq.s32.totalorder %s33, 1
      %p531 = por %p529, %p530
      %p533 = scmp.ne.s32.totalorder %s518, %s532
      %p534 = scmp.eq.s32.totalorder %s33, 0
      %p535 = por %p533, %p534
      %p536 = scmp.le.s32.totalorder 1, %s27
      %p537 = scmp.lt.s32.totalorder %s27, 3
      %p538 = pnand %p536, %p537
      %p539 = pneg %p538
      // Predicated region
      $region9: #{bert_class_forward.1} parent=5 // pred_check
        _
      $region10: #{bert_class_forward.1} parent=5 // pred_check_branch
        %541 = sbr.rel (%p538) target = $region12
      $region11: #{bert_class_forward.1} parent=5 // pred_region
        %s542 = ssub.s32 %s27, 1
        // Predicated region
        $region13: #{bert_class_forward.1} parent=11 // pred_check
          %p543 = pneg %p48
        $region14: #{bert_class_forward.1} parent=11 // pred_check_branch
          %545 = sbr.rel (%p543) target = $region16
        $region15: #{bert_class_forward.1} parent=11 // pred_region
          _
        $region16: #{bert_class_forward.1} parent=11 // pred_fallthru
          _
        // Predicated region
        $region17: #{bert_class_forward.1} parent=11 // pred_check
          %p546 = pneg %p69
        $region18: #{bert_class_forward.1} parent=11 // pred_check_branch
          %548 = sbr.rel (%p546) target = $region20
        $region19: #{bert_class_forward.1} parent=11 // pred_region
          _
        $region20: #{bert_class_forward.1} parent=11 // pred_fallthru
          _
        // Predicated region
        $region21: #{bert_class_forward.1} parent=11 // pred_check
          %p549 = pneg %p90
        $region22: #{bert_class_forward.1} parent=11 // pred_check_branch
          %551 = sbr.rel (%p549) target = $region24
        $region23: #{bert_class_forward.1} parent=11 // pred_region
          _
        $region24: #{bert_class_forward.1} parent=11 // pred_fallthru
          _
        // Predicated region
        $region25: #{bert_class_forward.1} parent=11 // pred_check
          %p552 = pneg %p111
        $region26: #{bert_class_forward.1} parent=11 // pred_check_branch
          %554 = sbr.rel (%p552) target = $region28
        $region27: #{bert_class_forward.1} parent=11 // pred_region
          _
        $region28: #{bert_class_forward.1} parent=11 // pred_fallthru
          _
        // Predicated region
        $region29: #{bert_class_forward.1} parent=11 // pred_check
          %p555 = pneg %p444
        $region30: #{bert_class_forward.1} parent=11 // pred_check_branch
          %557 = sbr.rel (%p555) target = $region32
        $region31: #{bert_class_forward.1} parent=11 // pred_region
          _
        $region32: #{bert_class_forward.1} parent=11 // pred_fallthru
          _
        // Predicated region
        $region33: #{bert_class_forward.1} parent=11 // pred_check
          %p558 = pneg %p465
        $region34: #{bert_class_forward.1} parent=11 // pred_check_branch
          %560 = sbr.rel (%p558) target = $region36
        $region35: #{bert_class_forward.1} parent=11 // pred_region
          _
        $region36: #{bert_class_forward.1} parent=11 // pred_fallthru
          _
        // Predicated region
        $region37: #{bert_class_forward.1} parent=11 // pred_check
          %p561 = pneg %p486
        $region38: #{bert_class_forward.1} parent=11 // pred_check_branch
          %563 = sbr.rel (%p561) target = $region40
        $region39: #{bert_class_forward.1} parent=11 // pred_region
          _
        $region40: #{bert_class_forward.1} parent=11 // pred_fallthru
          _
        // Predicated region
        $region41: #{bert_class_forward.1} parent=11 // pred_check
          %p564 = pneg %p507
        $region42: #{bert_class_forward.1} parent=11 // pred_check_branch
          %566 = sbr.rel (%p564) target = $region44
        $region43: #{bert_class_forward.1} parent=11 // pred_region
          _
        $region44: #{bert_class_forward.1} parent=11 // pred_fallthru
          _
      $region12: #{bert_class_forward.1} parent=5 // pred_fallthru
        _
      %p567 = scmp.lt.s32.totalorder %s27, 2
      // Predicated region
      $region45: #{bert_class_forward.1} parent=5 // pred_check
        %p568 = pneg %p567
      $region46: #{bert_class_forward.1} parent=5 // pred_check_branch
        %570 = sbr.rel (%p568) target = $region48
      $region47: #{bert_class_forward.1} parent=5 // pred_region
        // Predicated region
        $region49: #{bert_class_forward.1} parent=47 // pred_check
          %p571 = pneg %p131
        $region50: #{bert_class_forward.1} parent=47 // pred_check_branch
          %573 = sbr.rel (%p571) target = $region52
        $region51: #{bert_class_forward.1} parent=47 // pred_region
          %p574 = scmp.lt.s32.totalorder %s27, 1
          %s575 = scalar_select %p574, %s27, 1
          %s576 = smul.addr %s575, 4
          %s577 = smul.addr %s576, 4
          %s578 = scalar_lea.vmem %s4, %s577
        $region52: #{bert_class_forward.1} parent=47 // pred_fallthru
          _
        // Predicated region
        $region53: #{bert_class_forward.1} parent=47 // pred_check
          %p579 = pneg %p157
        $region54: #{bert_class_forward.1} parent=47 // pred_check_branch
          %581 = sbr.rel (%p579) target = $region56
        $region55: #{bert_class_forward.1} parent=47 // pred_region
          %p582 = scmp.lt.s32.totalorder %s27, 1
          %s583 = scalar_select %p582, %s27, 1
          %s584 = scalar_lea.vmem %s5, %s583
        $region56: #{bert_class_forward.1} parent=47 // pred_fallthru
          _
        // Predicated region
        $region57: #{bert_class_forward.1} parent=47 // pred_check
          %p585 = pneg %p183
        $region58: #{bert_class_forward.1} parent=47 // pred_check_branch
          %587 = sbr.rel (%p585) target = $region60
        $region59: #{bert_class_forward.1} parent=47 // pred_region
          %p588 = scmp.lt.s32.totalorder %s27, 1
          %s589 = scalar_select %p588, %s27, 1
          %s590 = smul.addr %s589, 4
          %s591 = smul.addr %s590, 4
          %s592 = scalar_lea.vmem %s6, %s591
        $region60: #{bert_class_forward.1} parent=47 // pred_fallthru
          _
        // Predicated region
        $region61: #{bert_class_forward.1} parent=47 // pred_check
          %p593 = pneg %p209
        $region62: #{bert_class_forward.1} parent=47 // pred_check_branch
          %595 = sbr.rel (%p593) target = $region64
        $region63: #{bert_class_forward.1} parent=47 // pred_region
          %p596 = scmp.lt.s32.totalorder %s27, 1
          %s597 = scalar_select %p596, %s27, 1
          %s598 = scalar_lea.vmem %s7, %s597
        $region64: #{bert_class_forward.1} parent=47 // pred_fallthru
          _
        // Predicated region
        $region65: #{bert_class_forward.1} parent=47 // pred_check
          %p599 = pneg %p235
        $region66: #{bert_class_forward.1} parent=47 // pred_check_branch
          %601 = sbr.rel (%p599) target = $region68
        $region67: #{bert_class_forward.1} parent=47 // pred_region
          %p602 = scmp.lt.s32.totalorder %s27, 1
          %s603 = scalar_select %p602, %s27, 1
          %s604 = scalar_lea.vmem %s8, %s603
        $region68: #{bert_class_forward.1} parent=47 // pred_fallthru
          _
        // Predicated region
        $region69: #{bert_class_forward.1} parent=47 // pred_check
          %p605 = pneg %p261
        $region70: #{bert_class_forward.1} parent=47 // pred_check_branch
          %607 = sbr.rel (%p605) target = $region72
        $region71: #{bert_class_forward.1} parent=47 // pred_region
          %p608 = scmp.lt.s32.totalorder %s27, 1
          %s609 = scalar_select %p608, %s27, 1
          %s610 = scalar_lea.vmem %s9, %s609
        $region72: #{bert_class_forward.1} parent=47 // pred_fallthru
          _
        // Predicated region
        $region73: #{bert_class_forward.1} parent=47 // pred_check
          %p611 = pneg %p287
        $region74: #{bert_class_forward.1} parent=47 // pred_check_branch
          %613 = sbr.rel (%p611) target = $region76
        $region75: #{bert_class_forward.1} parent=47 // pred_region
          %p614 = scmp.lt.s32.totalorder %s27, 1
          %s615 = scalar_select %p614, %s27, 1
          %s616 = smul.addr %s615, 4
          %s617 = smul.addr %s616, 4
          %s618 = scalar_lea.vmem %s10, %s617
        $region76: #{bert_class_forward.1} parent=47 // pred_fallthru
          _
        // Predicated region
        $region77: #{bert_class_forward.1} parent=47 // pred_check
          %p619 = pneg %p313
        $region78: #{bert_class_forward.1} parent=47 // pred_check_branch
          %621 = sbr.rel (%p619) target = $region80
        $region79: #{bert_class_forward.1} parent=47 // pred_region
          %p622 = scmp.lt.s32.totalorder %s27, 1
          %s623 = scalar_select %p622, %s27, 1
          %s624 = scalar_lea.vmem %s11, %s623
        $region80: #{bert_class_forward.1} parent=47 // pred_fallthru
          _
        // Predicated region
        $region81: #{bert_class_forward.1} parent=47 // pred_check
          %p625 = pneg %p339
        $region82: #{bert_class_forward.1} parent=47 // pred_check_branch
          %627 = sbr.rel (%p625) target = $region84
        $region83: #{bert_class_forward.1} parent=47 // pred_region
          %p628 = scmp.lt.s32.totalorder %s27, 1
          %s629 = scalar_select %p628, %s27, 1
          %s630 = smul.addr %s629, 8
          %s631 = smul.addr %s630, 4
          %s632 = scalar_lea.vmem %s12, %s631
        $region84: #{bert_class_forward.1} parent=47 // pred_fallthru
          _
        // Predicated region
        $region85: #{bert_class_forward.1} parent=47 // pred_check
          %p633 = pneg %p365
        $region86: #{bert_class_forward.1} parent=47 // pred_check_branch
          %635 = sbr.rel (%p633) target = $region88
        $region87: #{bert_class_forward.1} parent=47 // pred_region
          %p636 = scmp.lt.s32.totalorder %s27, 1
          %s637 = scalar_select %p636, %s27, 1
          %s638 = scalar_lea.vmem %s13, %s637
        $region88: #{bert_class_forward.1} parent=47 // pred_fallthru
          _
        // Predicated region
        $region89: #{bert_class_forward.1} parent=47 // pred_check
          %p639 = pneg %p391
        $region90: #{bert_class_forward.1} parent=47 // pred_check_branch
          %641 = sbr.rel (%p639) target = $region92
        $region91: #{bert_class_forward.1} parent=47 // pred_region
          %p642 = scmp.lt.s32.totalorder %s27, 1
          %s643 = scalar_select %p642, %s27, 1
          %s644 = scalar_lea.vmem %s14, %s643
        $region92: #{bert_class_forward.1} parent=47 // pred_fallthru
          _
        // Predicated region
        $region93: #{bert_class_forward.1} parent=47 // pred_check
          %p645 = pneg %p417
        $region94: #{bert_class_forward.1} parent=47 // pred_check_branch
          %647 = sbr.rel (%p645) target = $region96
        $region95: #{bert_class_forward.1} parent=47 // pred_region
          %p648 = scmp.lt.s32.totalorder %s27, 1
          %s649 = scalar_select %p648, %s27, 1
          %s650 = scalar_lea.vmem %s15, %s649
        $region96: #{bert_class_forward.1} parent=47 // pred_fallthru
          _
      $region48: #{bert_class_forward.1} parent=5 // pred_fallthru
        _
      %p651 = scmp.le.s32.totalorder 1, %s27
      %p652 = scmp.lt.s32.totalorder %s27, 3
      %p653 = pnand %p651, %p652
      %p654 = pneg %p653
      // Predicated region
      $region97: #{bert_class_forward.1} parent=5 // pred_check
        _
      $region98: #{bert_class_forward.1} parent=5 // pred_check_branch
        %656 = sbr.rel (%p653) target = $region100
      $region99: #{bert_class_forward.1} parent=5 // pred_region
        %s657 = ssub.s32 %s27, 1
        %p658 = pneg %p48
        %p659 = pneg %p45
        %p660 = pneg %p69
        %p661 = pneg %p66
        %p662 = pneg %p90
        %p663 = pneg %p87
        %p664 = pneg %p111
        %p665 = pneg %p108
        %p666 = scmp.lt.s32.totalorder %s32, 1
        %s667 = scalar_select %p666, %s32, 1
        %s668 = smul.addr %s667, 4
        %s669 = smul.addr %s668, 4
        %s670 = scalar_lea.vmem %s4, %s669
        %p671 = pneg %p137
        %p672 = pneg %p134
        %p673 = scmp.lt.s32.totalorder %s32, 1
        %s674 = scalar_select %p673, %s32, 1
        %s675 = scalar_lea.vmem %s5, %s674
        %p676 = pneg %p163
        %p677 = pneg %p160
        %p678 = scmp.lt.s32.totalorder %s32, 1
        %s679 = scalar_select %p678, %s32, 1
        %s680 = smul.addr %s679, 4
        %s681 = smul.addr %s680, 4
        %s682 = scalar_lea.vmem %s6, %s681
        %p683 = pneg %p189
        %p684 = pneg %p186
        %p685 = scmp.lt.s32.totalorder %s32, 1
        %s686 = scalar_select %p685, %s32, 1
        %s687 = scalar_lea.vmem %s7, %s686
        %p688 = pneg %p215
        %p689 = pneg %p212
        %p690 = scmp.lt.s32.totalorder %s32, 1
        %s691 = scalar_select %p690, %s32, 1
        %s692 = scalar_lea.vmem %s8, %s691
        %p693 = pneg %p241
        %p694 = pneg %p238
        %p695 = scmp.lt.s32.totalorder %s32, 1
        %s696 = scalar_select %p695, %s32, 1
        %s697 = scalar_lea.vmem %s9, %s696
        %p698 = pneg %p267
        %p699 = pneg %p264
        %p700 = scmp.lt.s32.totalorder %s32, 1
        %s701 = scalar_select %p700, %s32, 1
        %s702 = smul.addr %s701, 4
        %s703 = smul.addr %s702, 4
        %s704 = scalar_lea.vmem %s10, %s703
        %p705 = pneg %p293
        %p706 = pneg %p290
        %p707 = scmp.lt.s32.totalorder %s32, 1
        %s708 = scalar_select %p707, %s32, 1
        %s709 = scalar_lea.vmem %s11, %s708
        %p710 = pneg %p319
        %p711 = pneg %p316
        %p712 = scmp.lt.s32.totalorder %s32, 1
        %s713 = scalar_select %p712, %s32, 1
        %s714 = smul.addr %s713, 8
        %s715 = smul.addr %s714, 4
        %s716 = scalar_lea.vmem %s12, %s715
        %p717 = pneg %p345
        %p718 = pneg %p342
        %p719 = scmp.lt.s32.totalorder %s32, 1
        %s720 = scalar_select %p719, %s32, 1
        %s721 = scalar_lea.vmem %s13, %s720
        %p722 = pneg %p371
        %p723 = pneg %p368
        %p724 = scmp.lt.s32.totalorder %s32, 1
        %s725 = scalar_select %p724, %s32, 1
        %s726 = scalar_lea.vmem %s14, %s725
        %p727 = pneg %p397
        %p728 = pneg %p394
        %p729 = scmp.lt.s32.totalorder %s32, 1
        %s730 = scalar_select %p729, %s32, 1
        %s731 = scalar_lea.vmem %s15, %s730
        %p732 = pneg %p423
        %p733 = pneg %p420
        %p734 = pneg %p444
        %p735 = pneg %p441
        %p736 = pneg %p465
        %p737 = pneg %p462
        %p738 = pneg %p486
        %p739 = pneg %p483
        %p740 = pneg %p507
        %p741 = pneg %p504
        %p742 = pneg %p528
        %p743 = pneg %p525
        %p744 = scmp.lt.s32.totalorder %s32, 1
        %s745 = scalar_select %p744, %s32, 1
        %s746 = smul.addr %s745, 4
        %s747 = smul.addr %s746, 4
        %s748 = scalar_lea.vmem %s4, %s747
        %p749 = scmp.lt.s32.totalorder %s32, 1
        %s750 = scalar_select %p749, %s32, 1
        %s751 = scalar_lea.vmem %s5, %s750
        %p752 = scmp.lt.s32.totalorder %s32, 1
        %s753 = scalar_select %p752, %s32, 1
        %s754 = smul.addr %s753, 4
        %s755 = smul.addr %s754, 4
        %s756 = scalar_lea.vmem %s6, %s755
        %p757 = scmp.lt.s32.totalorder %s32, 1
        %s758 = scalar_select %p757, %s32, 1
        %s759 = scalar_lea.vmem %s7, %s758
        %p760 = scmp.lt.s32.totalorder %s32, 1
        %s761 = scalar_select %p760, %s32, 1
        %s762 = scalar_lea.vmem %s8, %s761
        %p763 = scmp.lt.s32.totalorder %s32, 1
        %s764 = scalar_select %p763, %s32, 1
        %s765 = scalar_lea.vmem %s9, %s764
        %p766 = scmp.lt.s32.totalorder %s32, 1
        %s767 = scalar_select %p766, %s32, 1
        %s768 = smul.addr %s767, 4
        %s769 = smul.addr %s768, 4
        %s770 = scalar_lea.vmem %s10, %s769
        %p771 = scmp.lt.s32.totalorder %s32, 1
        %s772 = scalar_select %p771, %s32, 1
        %s773 = scalar_lea.vmem %s11, %s772
        %p774 = scmp.lt.s32.totalorder %s32, 1
        %s775 = scalar_select %p774, %s32, 1
        %s776 = smul.addr %s775, 8
        %s777 = smul.addr %s776, 4
        %s778 = scalar_lea.vmem %s12, %s777
        %p779 = scmp.lt.s32.totalorder %s32, 1
        %s780 = scalar_select %p779, %s32, 1
        %s781 = scalar_lea.vmem %s13, %s780
        %p782 = scmp.lt.s32.totalorder %s32, 1
        %s783 = scalar_select %p782, %s32, 1
        %s784 = scalar_lea.vmem %s14, %s783
        %p785 = scmp.lt.s32.totalorder %s32, 1
        %s786 = scalar_select %p785, %s32, 1
        %s787 = scalar_lea.vmem %s15, %s786
        %p789 = scmp.eq.s32.totalorder %s32, 0
        // Predicated region
        $region101: #{bert_class_forward.1} parent=99 // pred_check
          %p790 = pneg %p789
        $region102: #{bert_class_forward.1} parent=99 // pred_check_branch
          %792 = sbr.rel (%p790) target = $region104
        $region103: #{bert_class_forward.1} parent=99 // pred_region
          %v793 = vld [vmem:[%s0] sm:$0xff]
          %v794 = vld [vmem:[%s0 + $0x8] sm:$0xff]
          %v795 = vld [vmem:[%s2] sm:$0x1]
          %v796 = vld [vmem:[%s3] sm:$0x1]
          %vm797 = vcmask 261120
          %v798 = vsel %vm797, %v793, 0.0
          %799 = vadd.xlane.f32.xlu0 %v798
          %v800 = vpop.xlane.xlu0 %799
          %v801 = vsel %vm797, %v794, 0.0
          %802 = vadd.xlane.f32.xlu0 %v801
          %v803 = vpop.xlane.xlu0 %802
          %v804 = vrcp.pop 32.0
          %v805 = vmul.f32 %v800, %v804
          %v806 = vmul.f32 %v803, %v804
          %v807 = vsub.f32 %v793, %v805
          %v808 = vsub.f32 %v794, %v806
          %v809 = vmul.f32 %v807, %v807
          %v810 = vmul.f32 %v808, %v808
          %v811 = vsel %vm797, %v809, 0.0
          %812 = vadd.xlane.f32.xlu0 %v811
          %v813 = vpop.xlane.xlu0 %812
          %v814 = vsel %vm797, %v810, 0.0
          %815 = vadd.xlane.f32.xlu0 %v814
          %v816 = vpop.xlane.xlu0 %815
          %v817 = vmul.f32 %v813, %v804
          %v818 = vmul.f32 %v816, %v804
          %v819 = vadd.f32 %v817, 1e-12
          %v820 = vadd.f32 %v818, 1e-12
          %v821 = vrsqrt.pop %v819
          %v822 = vrsqrt.pop %v820
          %v823 = vmul.f32 %v807, %v821
          %v824 = vmul.f32 %v808, %v822
          %v826 = vlaneseq
          %v827 = vshrl.u32 %v826, 7
          %v828 = vsub.s32 0, %v827
          %v829 = vrot.slane %v795, %v828
          %v831 = vmul.f32 %v823, %v829
          %v832 = vmul.f32 %v824, %v829
          %v834 = vlaneseq
          %v835 = vshrl.u32 %v834, 7
          %v836 = vsub.s32 0, %v835
          %v837 = vrot.slane %v796, %v836
          %v839 = vadd.f32 %v831, %v837
          %v840 = vadd.f32 %v832, %v837
          %841 = vst.msk [vmem:[#allocation2] sm:$0xff] %vm797, %v839
          %842 = vst.msk [vmem:[#allocation2 + $0x8] sm:$0xff] %vm797, %v840
        $region104: #{bert_class_forward.1} parent=99 // pred_fallthru
          _
        %v843 = vld [vmem:[#allocation2] sm:$0xff]
        %v844 = vld [vmem:[#allocation2 + $0x8] sm:$0xff]
        %v845 = vpack.c.bf16 %v844, %v843
        %v846 = vld [vmem:[%s748] sm:$0xf]
        %v847 = vld [vmem:[%s748 + $0x4] sm:$0xf]
        %v848 = vld [vmem:[%s748 + $0x8] sm:$0xf]
        %v849 = vld [vmem:[%s748 + $0xc] sm:$0xf]
        %v850 = vld [vmem:[%s751] sm:$0x1]
        %v852 = vlaneseq
        %v853 = vshrl.u32 %v852, 7
        %v854 = vsub.s32 0, %v853
        %v855 = vrot.slane %v850, %v854
        %v861 = vunpack.c.l.b16 %v846
        %v862 = vunpack.c.l.b16 %v847
        %v863 = vunpack.c.l.b16 %v848
        %v864 = vunpack.c.l.b16 %v849
        %v865 = vpack.c.b16 %v862, %v861
        %v866 = vpack.c.b16 %v864, %v863
        %vm869 = vcmask 261120
        %v871 = vsel %vm869, %v845, 0
        %873 = vmatprep.subr.bf16.mxu0 0
        %874 = vmatpush1.bf16.msra.mxu0 %v865
        %875 = vmatprep.subr.bf16.mxu0 0
        %876 = vmatpush1.bf16.msra.mxu0 %v866
        %877 = vmatprep.subr.bf16.mxu0 0
        %878 = vmatpush1.bf16.msra.mxu0 0
        %879 = vmatprep.subr.bf16.mxu0 0
        %880 = vmatpush1.bf16.msra.mxu0 0
        %881 = vmatprep.subr.bf16.mxu0 0
        %882 = vmatpush1.bf16.msra.mxu0 0
        %883 = vmatprep.subr.bf16.mxu0 0
        %884 = vmatpush1.bf16.msra.mxu0 0
        %885 = vmatprep.subr.bf16.mxu0 0
        %886 = vmatpush1.bf16.msra.mxu0 0
        %887 = vmatprep.subr.bf16.mxu0 0
        %888 = vmatpush1.bf16.msra.mxu0 0
        %889 = vmatprep.subr.bf16.mxu0 0
        %890 = vmatpush1.bf16.msra.mxu0 0
        %891 = vmatprep.subr.bf16.mxu0 0
        %892 = vmatpush1.bf16.msra.mxu0 0
        %893 = vmatprep.subr.bf16.mxu0 0
        %894 = vmatpush1.bf16.msra.mxu0 0
        %895 = vmatprep.subr.bf16.mxu0 0
        %896 = vmatpush1.bf16.msra.mxu0 0
        %897 = vmatprep.subr.bf16.mxu0 0
        %898 = vmatpush1.bf16.msra.mxu0 0
        %899 = vmatprep.subr.bf16.mxu0 0
        %900 = vmatpush1.bf16.msra.mxu0 0
        %901 = vmatprep.subr.bf16.mxu0 0
        %902 = vmatpush1.bf16.msra.mxu0 0
        %903 = vmatprep.subr.bf16.mxu0 0
        %904 = vmatpush1.bf16.msra.mxu0 0
        %905 = vmatprep.mubr.bf16.mxu0 0
        %906 = vmatmul.mubr.bf16.gmra.mrb[0].mxu0 %v871
        %v907 = vpop.f32.mrb[0].mxu0
        %v908 = vadd.f32 %v855, %v907
        %v909 = vpop.f32.mrb[0].mxu0
        %v910 = vpop.f32.mrb[0].mxu0
        %v911 = vadd.f32 %v855, %v910
        %v912 = vpop.f32.mrb[0].mxu0
        %913 = vdwg.mxu0
        %v914 = vld [vmem:[%s1] sm:$0xff]
        %v915 = vld [vmem:[%s1 + $0x8] sm:$0xff]
        %v916 = vld [vmem:[%s756] sm:$0xf]
        %v917 = vld [vmem:[%s756 + $0x4] sm:$0xf]
        %v918 = vld [vmem:[%s756 + $0x8] sm:$0xf]
        %v919 = vld [vmem:[%s756 + $0xc] sm:$0xf]
        %v920 = vpack.c.bf16 %v911, %v908
        %922 = vrot.lane.b32.xlu0 %v920, 96
        %v923 = vpop.permute.xlu0 %922
        %vm924 = vcmask 130048
        %v926 = vsel %vm924, %v920, 0
        %v929 = vsel %vm924, %v923, 0
        %931 = vmatprep.subr.bf16.mxu0 0
        %932 = vmatpush1.bf16.xpose.msra.mxu0 %v929
        %933 = vmatprep.subr.bf16.mxu0 0
        %934 = vmatpush1.bf16.xpose.msra.mxu0 0
        %935 = vmatprep.subr.bf16.mxu0 0
        %936 = vmatpush1.bf16.xpose.msra.mxu0 0
        %937 = vmatprep.subr.bf16.mxu0 0
        %938 = vmatpush1.bf16.xpose.msra.mxu0 0
        %939 = vmatprep.subr.bf16.mxu0 0
        %940 = vmatpush1.bf16.xpose.msra.mxu0 0
        %941 = vmatprep.subr.bf16.mxu0 0
        %942 = vmatpush1.bf16.xpose.msra.mxu0 0
        %943 = vmatprep.subr.bf16.mxu0 0
        %944 = vmatpush1.bf16.xpose.msra.mxu0 0
        %945 = vmatprep.subr.bf16.mxu0 0
        %946 = vmatpush1.bf16.xpose.msra.mxu0 0
        %947 = vmatprep.subr.bf16.mxu0 0
        %948 = vmatpush1.bf16.xpose.msra.mxu0 0
        %949 = vmatprep.subr.bf16.mxu0 0
        %950 = vmatpush1.bf16.xpose.msra.mxu0 0
        %951 = vmatprep.subr.bf16.mxu0 0
        %952 = vmatpush1.bf16.xpose.msra.mxu0 0
        %953 = vmatprep.subr.bf16.mxu0 0
        %954 = vmatpush1.bf16.xpose.msra.mxu0 0
        %955 = vmatprep.subr.bf16.mxu0 0
        %956 = vmatpush1.bf16.xpose.msra.mxu0 0
        %957 = vmatprep.subr.bf16.mxu0 0
        %958 = vmatpush1.bf16.xpose.msra.mxu0 0
        %959 = vmatprep.subr.bf16.mxu0 0
        %960 = vmatpush1.bf16.xpose.msra.mxu0 0
        %961 = vmatprep.subr.bf16.mxu0 0
        %962 = vmatpush1.bf16.xpose.msra.mxu0 0
        %963 = vmatprep.mubr.bf16.mxu0 0
        %964 = vmatmul.mubr.bf16.gmra.mrb[0].mxu0 %v926
        %v965 = vpop.f32.mrb[0].mxu0
        %v966 = vadd.f32 %v914, %v965
        %v967 = vpop.f32.mrb[0].mxu0
        %v968 = vpop.f32.mrb[0].mxu0
        %v969 = vadd.f32 %v915, %v968
        %v970 = vpop.f32.mrb[0].mxu0
        %971 = vdwg.mxu0
        %v972 = vsel %vm924, %v966, -inf
        %973 = vmax.xlane.f32.xlu0 %v972
        %v974 = vpop.xlane.xlu0 %973
        %v975 = vsel %vm924, %v969, -inf
        %976 = vmax.xlane.f32.xlu0 %v975
        %v977 = vpop.xlane.xlu0 %976
        %v978 = vsub.f32 %v966, %v974
        %v979 = vsub.f32 %v969, %v977
        %v980 = vmul.f32 %v978, 1.442695
        %v981 = vpow.pop %v980
        %v982 = vmul.f32 %v979, 1.442695
        %v983 = vpow.pop %v982
        %v984 = vsel %vm924, %v981, 0.0
        %985 = vadd.xlane.f32.xlu0 %v984
        %v986 = vpop.xlane.xlu0 %985
        %v987 = vsel %vm924, %v983, 0.0
        %988 = vadd.xlane.f32.xlu0 %v987
        %v989 = vpop.xlane.xlu0 %988
        %v990 = vrcp.pop %v986
        %v991 = vrcp.pop %v989
        %v992 = vmul.f32 %v981, %v990
        %v993 = vmul.f32 %v983, %v991
        %v994 = vpack.c.bf16 %v993, %v992
        %995 = vrot.lane.b32.xlu0 %v920, 64
        %v996 = vpop.permute.xlu0 %995
        %v999 = vsel %vm924, %v994, 0
        %1001 = vmatprep.subr.bf16.mxu0 0
        %1002 = vmatpush1.bf16.msra.mxu0 %v996
        %1003 = vmatprep.subr.bf16.mxu0 0
        %1004 = vmatpush1.bf16.msra.mxu0 0
        %1005 = vmatprep.subr.bf16.mxu0 0
        %1006 = vmatpush1.bf16.msra.mxu0 0
        %1007 = vmatprep.subr.bf16.mxu0 0
        %1008 = vmatpush1.bf16.msra.mxu0 0
        %1009 = vmatprep.subr.bf16.mxu0 0
        %1010 = vmatpush1.bf16.msra.mxu0 0
        %1011 = vmatprep.subr.bf16.mxu0 0
        %1012 = vmatpush1.bf16.msra.mxu0 0
        %1013 = vmatprep.subr.bf16.mxu0 0
        %1014 = vmatpush1.bf16.msra.mxu0 0
        %1015 = vmatprep.subr.bf16.mxu0 0
        %1016 = vmatpush1.bf16.msra.mxu0 0
        %1017 = vmatprep.subr.bf16.mxu0 0
        %1018 = vmatpush1.bf16.msra.mxu0 0
        %1019 = vmatprep.subr.bf16.mxu0 0
        %1020 = vmatpush1.bf16.msra.mxu0 0
        %1021 = vmatprep.subr.bf16.mxu0 0
        %1022 = vmatpush1.bf16.msra.mxu0 0
        %1023 = vmatprep.subr.bf16.mxu0 0
        %1024 = vmatpush1.bf16.msra.mxu0 0
        %1025 = vmatprep.subr.bf16.mxu0 0
        %1026 = vmatpush1.bf16.msra.mxu0 0
        %1027 = vmatprep.subr.bf16.mxu0 0
        %1028 = vmatpush1.bf16.msra.mxu0 0
        %1029 = vmatprep.subr.bf16.mxu0 0
        %1030 = vmatpush1.bf16.msra.mxu0 0
        %1031 = vmatprep.subr.bf16.mxu0 0
        %1032 = vmatpush1.bf16.msra.mxu0 0
        %1033 = vmatprep.mubr.bf16.mxu0 0
        %1034 = vmatmul.mubr.bf16.gmra.mrb[0].mxu0 %v999
        %v1035 = vpop.f32.mrb[0].mxu0
        %v1036 = vadd.f32 0.0, %v1035
        %v1037 = vpop.f32.mrb[0].mxu0
        %v1038 = vpop.f32.mrb[0].mxu0
        %v1039 = vadd.f32 0.0, %v1038
        %v1040 = vpop.f32.mrb[0].mxu0
        %1041 = vdwg.mxu0
        %v1042 = vpack.c.bf16 %v1039, %v1036
        %1043 = vrot.lane.b32.xlu0 %v920, 112
        %v1044 = vpop.permute.xlu0 %1043
        %1045 = vrot.lane.b32.xlu0 %v920, 80
        %v1046 = vpop.permute.xlu0 %1045
        %v1048 = vsel %vm924, %v1044, 0
        %v1051 = vsel %vm924, %v1046, 0
        %1053 = vmatprep.subr.bf16.mxu0 0
        %1054 = vmatpush1.bf16.xpose.msra.mxu0 %v1051
        %1055 = vmatprep.subr.bf16.mxu0 0
        %1056 = vmatpush1.bf16.xpose.msra.mxu0 0
        %1057 = vmatprep.subr.bf16.mxu0 0
        %1058 = vmatpush1.bf16.xpose.msra.mxu0 0
        %1059 = vmatprep.subr.bf16.mxu0 0
        %1060 = vmatpush1.bf16.xpose.msra.mxu0 0
        %1061 = vmatprep.subr.bf16.mxu0 0
        %1062 = vmatpush1.bf16.xpose.msra.mxu0 0
        %1063 = vmatprep.subr.bf16.mxu0 0
        %1064 = vmatpush1.bf16.xpose.msra.mxu0 0
        %1065 = vmatprep.subr.bf16.mxu0 0
        %1066 = vmatpush1.bf16.xpose.msra.mxu0 0
        %1067 = vmatprep.subr.bf16.mxu0 0
        %1068 = vmatpush1.bf16.xpose.msra.mxu0 0
        %1069 = vmatprep.subr.bf16.mxu0 0
        %1070 = vmatpush1.bf16.xpose.msra.mxu0 0
        %1071 = vmatprep.subr.bf16.mxu0 0
        %1072 = vmatpush1.bf16.xpose.msra.mxu0 0
        %1073 = vmatprep.subr.bf16.mxu0 0
        %1074 = vmatpush1.bf16.xpose.msra.mxu0 0
        %1075 = vmatprep.subr.bf16.mxu0 0
        %1076 = vmatpush1.bf16.xpose.msra.mxu0 0
        %1077 = vmatprep.subr.bf16.mxu0 0
        %1078 = vmatpush1.bf16.xpose.msra.mxu0 0
        %1079 = vmatprep.subr.bf16.mxu0 0
        %1080 = vmatpush1.bf16.xpose.msra.mxu0 0
        %1081 = vmatprep.subr.bf16.mxu0 0
        %1082 = vmatpush1.bf16.xpose.msra.mxu0 0
        %1083 = vmatprep.subr.bf16.mxu0 0
        %1084 = vmatpush1.bf16.xpose.msra.mxu0 0
        %1085 = vmatprep.mubr.bf16.mxu0 0
        %1086 = vmatmul.mubr.bf16.gmra.mrb[0].mxu0 %v1048
        %v1087 = vpop.f32.mrb[0].mxu0
        %v1088 = vadd.f32 %v914, %v1087
        %v1089 = vpop.f32.mrb[0].mxu0
        %v1090 = vpop.f32.mrb[0].mxu0
        %v1091 = vadd.f32 %v915, %v1090
        %v1092 = vpop.f32.mrb[0].mxu0
        %1093 = vdwg.mxu0
        %v1094 = vsel %vm924, %v1088, -inf
        %1095 = vmax.xlane.f32.xlu0 %v1094
        %v1096 = vpop.xlane.xlu0 %1095
        %v1097 = vsel %vm924, %v1091, -inf
        %1098 = vmax.xlane.f32.xlu0 %v1097
        %v1099 = vpop.xlane.xlu0 %1098
        %v1100 = vsub.f32 %v1088, %v1096
        %v1101 = vsub.f32 %v1091, %v1099
        %v1102 = vmul.f32 %v1100, 1.442695
        %v1103 = vpow.pop %v1102
        %v1104 = vmul.f32 %v1101, 1.442695
        %v1105 = vpow.pop %v1104
        %v1106 = vsel %vm924, %v1103, 0.0
        %1107 = vadd.xlane.f32.xlu0 %v1106
        %v1108 = vpop.xlane.xlu0 %1107
        %v1109 = vsel %vm924, %v1105, 0.0
        %1110 = vadd.xlane.f32.xlu0 %v1109
        %v1111 = vpop.xlane.xlu0 %1110
        %v1112 = vrcp.pop %v1108
        %v1113 = vrcp.pop %v1111
        %v1114 = vmul.f32 %v1103, %v1112
        %v1115 = vmul.f32 %v1105, %v1113
        %v1116 = vpack.c.bf16 %v1115, %v1114
        %1117 = vrot.lane.b32.xlu0 %v920, 48
        %v1118 = vpop.permute.xlu0 %1117
        %v1121 = vsel %vm924, %v1116, 0
        %1123 = vmatprep.subr.bf16.mxu0 0
        %1124 = vmatpush1.bf16.msra.mxu0 %v1118
        %1125 = vmatprep.subr.bf16.mxu0 0
        %1126 = vmatpush1.bf16.msra.mxu0 0
        %1127 = vmatprep.subr.bf16.mxu0 0
        %1128 = vmatpush1.bf16.msra.mxu0 0
        %1129 = vmatprep.subr.bf16.mxu0 0
        %1130 = vmatpush1.bf16.msra.mxu0 0
        %1131 = vmatprep.subr.bf16.mxu0 0
        %1132 = vmatpush1.bf16.msra.mxu0 0
        %1133 = vmatprep.subr.bf16.mxu0 0
        %1134 = vmatpush1.bf16.msra.mxu0 0
        %1135 = vmatprep.subr.bf16.mxu0 0
        %1136 = vmatpush1.bf16.msra.mxu0 0
        %1137 = vmatprep.subr.bf16.mxu0 0
        %1138 = vmatpush1.bf16.msra.mxu0 0
        %1139 = vmatprep.subr.bf16.mxu0 0
        %1140 = vmatpush1.bf16.msra.mxu0 0
        %1141 = vmatprep.subr.bf16.mxu0 0
        %1142 = vmatpush1.bf16.msra.mxu0 0
        %1143 = vmatprep.subr.bf16.mxu0 0
        %1144 = vmatpush1.bf16.msra.mxu0 0
        %1145 = vmatprep.subr.bf16.mxu0 0
        %1146 = vmatpush1.bf16.msra.mxu0 0
        %1147 = vmatprep.subr.bf16.mxu0 0
        %1148 = vmatpush1.bf16.msra.mxu0 0
        %1149 = vmatprep.subr.bf16.mxu0 0
        %1150 = vmatpush1.bf16.msra.mxu0 0
        %1151 = vmatprep.subr.bf16.mxu0 0
        %1152 = vmatpush1.bf16.msra.mxu0 0
        %1153 = vmatprep.subr.bf16.mxu0 0
        %1154 = vmatpush1.bf16.msra.mxu0 0
        %1155 = vmatprep.mubr.bf16.mxu0 0
        %1156 = vmatmul.mubr.bf16.gmra.mrb[0].mxu0 %v1121
        %v1157 = vpop.f32.mrb[0].mxu0
        %v1158 = vadd.f32 0.0, %v1157
        %v1159 = vpop.f32.mrb[0].mxu0
        %v1160 = vpop.f32.mrb[0].mxu0
        %v1161 = vadd.f32 0.0, %v1160
        %v1162 = vpop.f32.mrb[0].mxu0
        %1163 = vdwg.mxu0
        %v1164 = vpack.c.bf16 %v1161, %v1158
        %v1167 = vunpack.c.l.b16 %v918
        %v1168 = vunpack.c.l.b16 %v919
        %v1169 = vpack.c.b16 %v1168, %v1167
        %v1172 = vsel %vm924, %v1164, 0
        %1174 = vmatprep.subr.bf16.mxu0 0
        %1175 = vmatpush1.bf16.msra.mxu0 %v1169
        %1176 = vmatprep.subr.bf16.mxu0 0
        %1177 = vmatpush1.bf16.msra.mxu0 0
        %1178 = vmatprep.subr.bf16.mxu0 0
        %1179 = vmatpush1.bf16.msra.mxu0 0
        %1180 = vmatprep.subr.bf16.mxu0 0
        %1181 = vmatpush1.bf16.msra.mxu0 0
        %1182 = vmatprep.subr.bf16.mxu0 0
        %1183 = vmatpush1.bf16.msra.mxu0 0
        %1184 = vmatprep.subr.bf16.mxu0 0
        %1185 = vmatpush1.bf16.msra.mxu0 0
        %1186 = vmatprep.subr.bf16.mxu0 0
        %1187 = vmatpush1.bf16.msra.mxu0 0
        %1188 = vmatprep.subr.bf16.mxu0 0
        %1189 = vmatpush1.bf16.msra.mxu0 0
        %1190 = vmatprep.subr.bf16.mxu0 0
        %1191 = vmatpush1.bf16.msra.mxu0 0
        %1192 = vmatprep.subr.bf16.mxu0 0
        %1193 = vmatpush1.bf16.msra.mxu0 0
        %1194 = vmatprep.subr.bf16.mxu0 0
        %1195 = vmatpush1.bf16.msra.mxu0 0
        %1196 = vmatprep.subr.bf16.mxu0 0
        %1197 = vmatpush1.bf16.msra.mxu0 0
        %1198 = vmatprep.subr.bf16.mxu0 0
        %1199 = vmatpush1.bf16.msra.mxu0 0
        %1200 = vmatprep.subr.bf16.mxu0 0
        %1201 = vmatpush1.bf16.msra.mxu0 0
        %1202 = vmatprep.subr.bf16.mxu0 0
        %1203 = vmatpush1.bf16.msra.mxu0 0
        %1204 = vmatprep.subr.bf16.mxu0 0
        %1205 = vmatpush1.bf16.msra.mxu0 0
        %1206 = vmatprep.mubr.bf16.mxu0 0
        %1207 = vmatmul.mubr.bf16.gmra.mrb[0].mxu0 %v1172
        %v1208 = vpop.f32.mrb[0].mxu0
        %v1209 = vadd.f32 0.0, %v1208
        %v1210 = vpop.f32.mrb[0].mxu0
        %v1211 = vpop.f32.mrb[0].mxu0
        %v1212 = vadd.f32 0.0, %v1211
        %v1213 = vpop.f32.mrb[0].mxu0
        %1214 = vdwg.mxu0
        %v1217 = vunpack.c.l.b16 %v916
        %v1218 = vunpack.c.l.b16 %v917
        %v1219 = vpack.c.b16 %v1218, %v1217
        %v1222 = vsel %vm924, %v1042, 0
        %1224 = vmatprep.subr.bf16.mxu0 0
        %1225 = vmatpush1.bf16.msra.mxu0 %v1219
        %1226 = vmatprep.subr.bf16.mxu0 0
        %1227 = vmatpush1.bf16.msra.mxu0 0
        %1228 = vmatprep.subr.bf16.mxu0 0
        %1229 = vmatpush1.bf16.msra.mxu0 0
        %1230 = vmatprep.subr.bf16.mxu0 0
        %1231 = vmatpush1.bf16.msra.mxu0 0
        %1232 = vmatprep.subr.bf16.mxu0 0
        %1233 = vmatpush1.bf16.msra.mxu0 0
        %1234 = vmatprep.subr.bf16.mxu0 0
        %1235 = vmatpush1.bf16.msra.mxu0 0
        %1236 = vmatprep.subr.bf16.mxu0 0
        %1237 = vmatpush1.bf16.msra.mxu0 0
        %1238 = vmatprep.subr.bf16.mxu0 0
        %1239 = vmatpush1.bf16.msra.mxu0 0
        %1240 = vmatprep.subr.bf16.mxu0 0
        %1241 = vmatpush1.bf16.msra.mxu0 0
        %1242 = vmatprep.subr.bf16.mxu0 0
        %1243 = vmatpush1.bf16.msra.mxu0 0
        %1244 = vmatprep.subr.bf16.mxu0 0
        %1245 = vmatpush1.bf16.msra.mxu0 0
        %1246 = vmatprep.subr.bf16.mxu0 0
        %1247 = vmatpush1.bf16.msra.mxu0 0
        %1248 = vmatprep.subr.bf16.mxu0 0
        %1249 = vmatpush1.bf16.msra.mxu0 0
        %1250 = vmatprep.subr.bf16.mxu0 0
        %1251 = vmatpush1.bf16.msra.mxu0 0
        %1252 = vmatprep.subr.bf16.mxu0 0
        %1253 = vmatpush1.bf16.msra.mxu0 0
        %1254 = vmatprep.subr.bf16.mxu0 0
        %1255 = vmatpush1.bf16.msra.mxu0 0
        %1256 = vmatprep.mubr.bf16.mxu0 0
        %1257 = vmatmul.mubr.bf16.gmra.mrb[0].mxu0 %v1222
        %v1258 = vpop.f32.mrb[0].mxu0
        %v1259 = vadd.f32 %v1209, %v1258
        %v1260 = vpop.f32.mrb[0].mxu0
        %v1261 = vpop.f32.mrb[0].mxu0
        %v1262 = vadd.f32 %v1212, %v1261
        %v1263 = vpop.f32.mrb[0].mxu0
        %1264 = vdwg.mxu0
        %v1265 = vld [vmem:[%s759] sm:$0x1]
        %v1267 = vlaneseq
        %v1268 = vshrl.u32 %v1267, 7
        %v1269 = vsub.s32 0, %v1268
        %v1270 = vrot.slane %v1265, %v1269
        %v1272 = vadd.f32 %v1259, %v1270
        %v1273 = vadd.f32 %v1262, %v1270
        %v1274 = vadd.f32 %v843, %v1272
        %v1275 = vadd.f32 %v844, %v1273
        %v1276 = vld [vmem:[%s762] sm:$0x1]
        %v1277 = vld [vmem:[%s765] sm:$0x1]
        %v1278 = vsel %vm869, %v1274, 0.0
        %1279 = vadd.xlane.f32.xlu0 %v1278
        %v1280 = vpop.xlane.xlu0 %1279
        %v1281 = vsel %vm869, %v1275, 0.0
        %1282 = vadd.xlane.f32.xlu0 %v1281
        %v1283 = vpop.xlane.xlu0 %1282
        %v1284 = vrcp.pop 32.0
        %v1285 = vmul.f32 %v1280, %v1284
        %v1286 = vmul.f32 %v1283, %v1284
        %v1287 = vsub.f32 %v1274, %v1285
        %v1288 = vsub.f32 %v1275, %v1286
        %v1289 = vmul.f32 %v1287, %v1287
        %v1290 = vmul.f32 %v1288, %v1288
        %v1291 = vsel %vm869, %v1289, 0.0
        %1292 = vadd.xlane.f32.xlu0 %v1291
        %v1293 = vpop.xlane.xlu0 %1292
        %v1294 = vsel %vm869, %v1290, 0.0
        %1295 = vadd.xlane.f32.xlu0 %v1294
        %v1296 = vpop.xlane.xlu0 %1295
        %v1297 = vmul.f32 %v1293, %v1284
        %v1298 = vmul.f32 %v1296, %v1284
        %v1299 = vadd.f32 %v1297, 1e-12
        %v1300 = vadd.f32 %v1298, 1e-12
        %v1301 = vrsqrt.pop %v1299
        %v1302 = vrsqrt.pop %v1300
        %v1303 = vmul.f32 %v1287, %v1301
        %v1304 = vmul.f32 %v1288, %v1302
        %v1306 = vlaneseq
        %v1307 = vshrl.u32 %v1306, 7
        %v1308 = vsub.s32 0, %v1307
        %v1309 = vrot.slane %v1276, %v1308
        %v1311 = vmul.f32 %v1303, %v1309
        %v1312 = vmul.f32 %v1304, %v1309
        %v1314 = vlaneseq
        %v1315 = vshrl.u32 %v1314, 7
        %v1316 = vsub.s32 0, %v1315
        %v1317 = vrot.slane %v1277, %v1316
        %v1319 = vadd.f32 %v1311, %v1317
        %v1320 = vadd.f32 %v1312, %v1317
        %v1321 = vpack.c.bf16 %v1320, %v1319
        %v1322 = vld [vmem:[%s770] sm:$0xf]
        %v1323 = vld [vmem:[%s770 + $0x4] sm:$0xf]
        %v1324 = vld [vmem:[%s770 + $0x8] sm:$0xf]
        %v1325 = vld [vmem:[%s770 + $0xc] sm:$0xf]
        %v1326 = vld [vmem:[%s773] sm:$0x1]
        %v1328 = vlaneseq
        %v1329 = vshrl.u32 %v1328, 7
        %v1330 = vsub.s32 0, %v1329
        %v1331 = vrot.slane %v1326, %v1330
        %v1337 = vunpack.c.l.b16 %v1322
        %v1338 = vunpack.c.l.b16 %v1323
        %v1339 = vunpack.c.l.b16 %v1324
        %v1340 = vunpack.c.l.b16 %v1325
        %v1341 = vpack.c.b16 %v1338, %v1337
        %v1342 = vpack.c.b16 %v1340, %v1339
        %v1346 = vsel %vm869, %v1321, 0
        %1348 = vmatprep.subr.bf16.mxu0 0
        %1349 = vmatpush1.bf16.msra.mxu0 %v1341
        %1350 = vmatprep.subr.bf16.mxu0 0
        %1351 = vmatpush1.bf16.msra.mxu0 %v1342
        %1352 = vmatprep.subr.bf16.mxu0 0
        %1353 = vmatpush1.bf16.msra.mxu0 0
        %1354 = vmatprep.subr.bf16.mxu0 0
        %1355 = vmatpush1.bf16.msra.mxu0 0
        %1356 = vmatprep.subr.bf16.mxu0 0
        %1357 = vmatpush1.bf16.msra.mxu0 0
        %1358 = vmatprep.subr.bf16.mxu0 0
        %1359 = vmatpush1.bf16.msra.mxu0 0
        %1360 = vmatprep.subr.bf16.mxu0 0
        %1361 = vmatpush1.bf16.msra.mxu0 0
        %1362 = vmatprep.subr.bf16.mxu0 0
        %1363 = vmatpush1.bf16.msra.mxu0 0
        %1364 = vmatprep.subr.bf16.mxu0 0
        %1365 = vmatpush1.bf16.msra.mxu0 0
        %1366 = vmatprep.subr.bf16.mxu0 0
        %1367 = vmatpush1.bf16.msra.mxu0 0
        %1368 = vmatprep.subr.bf16.mxu0 0
        %1369 = vmatpush1.bf16.msra.mxu0 0
        %1370 = vmatprep.subr.bf16.mxu0 0
        %1371 = vmatpush1.bf16.msra.mxu0 0
        %1372 = vmatprep.subr.bf16.mxu0 0
        %1373 = vmatpush1.bf16.msra.mxu0 0
        %1374 = vmatprep.subr.bf16.mxu0 0
        %1375 = vmatpush1.bf16.msra.mxu0 0
        %1376 = vmatprep.subr.bf16.mxu0 0
        %1377 = vmatpush1.bf16.msra.mxu0 0
        %1378 = vmatprep.subr.bf16.mxu0 0
        %1379 = vmatpush1.bf16.msra.mxu0 0
        %1380 = vmatprep.mubr.bf16.mxu0 0
        %1381 = vmatmul.mubr.bf16.gmra.mrb[0].mxu0 %v1346
        %v1382 = vpop.f32.mrb[0].mxu0
        %v1383 = vadd.f32 %v1331, %v1382
        %v1384 = vpop.f32.mrb[0].mxu0
        %v1385 = vpop.f32.mrb[0].mxu0
        %v1386 = vadd.f32 %v1331, %v1385
        %v1387 = vpop.f32.mrb[0].mxu0
        %1388 = vdwg.mxu0
        %v1389 = vmul.f32 %v1383, 0.5
        %v1390 = vmul.f32 %v1386, 0.5
        %v1391 = vmul.f32 %v1383, 0.044715
        %v1392 = vmul.f32 %v1386, 0.044715
        %v1393 = vmul.f32 %v1391, %v1383
        %v1394 = vmul.f32 %v1392, %v1386
        %v1395 = vmul.f32 %v1393, %v1383
        %v1396 = vmul.f32 %v1394, %v1386
        %v1397 = vadd.f32 %v1383, %v1395
        %v1398 = vadd.f32 %v1386, %v1396
        %v1399 = vmul.f32 %v1397, 0.7978846
        %v1400 = vmul.f32 %v1398, 0.7978846
        %v1401 = vtanh.pop %v1399
        %v1402 = vtanh.pop %v1400
        %v1403 = vadd.f32 %v1401, 1.0
        %v1404 = vadd.f32 %v1402, 1.0
        %v1405 = vmul.f32 %v1389, %v1403
        %v1406 = vmul.f32 %v1390, %v1404
        %v1407 = vpack.c.bf16 %v1406, %v1405
        %v1408 = vld [vmem:[%s778] sm:$0xf]
        %v1409 = vld [vmem:[%s778 + $0x4] sm:$0xf]
        %v1410 = vld [vmem:[%s778 + $0x8] sm:$0xf]
        %v1411 = vld [vmem:[%s778 + $0xc] sm:$0xf]
        %v1412 = vld [vmem:[%s778 + $0x10] sm:$0xf]
        %v1413 = vld [vmem:[%s778 + $0x14] sm:$0xf]
        %v1414 = vld [vmem:[%s778 + $0x18] sm:$0xf]
        %v1415 = vld [vmem:[%s778 + $0x1c] sm:$0xf]
        %v1416 = vld [vmem:[%s781] sm:$0x1]
        %v1418 = vlaneseq
        %v1419 = vshrl.u32 %v1418, 7
        %v1420 = vsub.s32 0, %v1419
        %v1421 = vrot.slane %v1416, %v1420
        %v1431 = vunpack.c.l.b16 %v1408
        %v1432 = vunpack.c.l.b16 %v1409
        %v1433 = vunpack.c.l.b16 %v1410
        %v1434 = vunpack.c.l.b16 %v1411
        %v1435 = vunpack.c.l.b16 %v1412
        %v1436 = vunpack.c.l.b16 %v1413
        %v1437 = vunpack.c.l.b16 %v1414
        %v1438 = vunpack.c.l.b16 %v1415
        %v1439 = vpack.c.b16 %v1432, %v1431
        %v1440 = vpack.c.b16 %v1434, %v1433
        %v1441 = vpack.c.b16 %v1436, %v1435
        %v1442 = vpack.c.b16 %v1438, %v1437
        %vm1447 = vcmask 523264
        %v1449 = vsel %vm1447, %v1407, 0
        %1451 = vmatprep.subr.bf16.mxu0 0
        %1452 = vmatpush1.bf16.msra.mxu0 %v1439
        %1453 = vmatprep.subr.bf16.mxu0 0
        %1454 = vmatpush1.bf16.msra.mxu0 %v1440
        %1455 = vmatprep.subr.bf16.mxu0 0
        %1456 = vmatpush1.bf16.msra.mxu0 %v1441
        %1457 = vmatprep.subr.bf16.mxu0 0
        %1458 = vmatpush1.bf16.msra.mxu0 %v1442
        %1459 = vmatprep.subr.bf16.mxu0 0
        %1460 = vmatpush1.bf16.msra.mxu0 0
        %1461 = vmatprep.subr.bf16.mxu0 0
        %1462 = vmatpush1.bf16.msra.mxu0 0
        %1463 = vmatprep.subr.bf16.mxu0 0
        %1464 = vmatpush1.bf16.msra.mxu0 0
        %1465 = vmatprep.subr.bf16.mxu0 0
        %1466 = vmatpush1.bf16.msra.mxu0 0
        %1467 = vmatprep.subr.bf16.mxu0 0
        %1468 = vmatpush1.bf16.msra.mxu0 0
        %1469 = vmatprep.subr.bf16.mxu0 0
        %1470 = vmatpush1.bf16.msra.mxu0 0
        %1471 = vmatprep.subr.bf16.mxu0 0
        %1472 = vmatpush1.bf16.msra.mxu0 0
        %1473 = vmatprep.subr.bf16.mxu0 0
        %1474 = vmatpush1.bf16.msra.mxu0 0
        %1475 = vmatprep.subr.bf16.mxu0 0
        %1476 = vmatpush1.bf16.msra.mxu0 0
        %1477 = vmatprep.subr.bf16.mxu0 0
        %1478 = vmatpush1.bf16.msra.mxu0 0
        %1479 = vmatprep.subr.bf16.mxu0 0
        %1480 = vmatpush1.bf16.msra.mxu0 0
        %1481 = vmatprep.subr.bf16.mxu0 0
        %1482 = vmatpush1.bf16.msra.mxu0 0
        %1483 = vmatprep.mubr.bf16.mxu0 0
        %1484 = vmatmul.mubr.bf16.gmra.mrb[0].mxu0 %v1449
        %v1485 = vpop.f32.mrb[0].mxu0
        %v1486 = vadd.f32 %v1421, %v1485
        %v1487 = vpop.f32.mrb[0].mxu0
        %v1488 = vpop.f32.mrb[0].mxu0
        %v1489 = vadd.f32 %v1421, %v1488
        %v1490 = vpop.f32.mrb[0].mxu0
        %1491 = vdwg.mxu0
        %v1492 = vadd.f32 %v1319, %v1486
        %v1493 = vadd.f32 %v1320, %v1489
        %v1494 = vld [vmem:[%s784] sm:$0x1]
        %v1495 = vld [vmem:[%s787] sm:$0x1]
        %v1496 = vsel %vm869, %v1492, 0.0
        %1497 = vadd.xlane.f32.xlu0 %v1496
        %v1498 = vpop.xlane.xlu0 %1497
        %v1499 = vsel %vm869, %v1493, 0.0
        %1500 = vadd.xlane.f32.xlu0 %v1499
        %v1501 = vpop.xlane.xlu0 %1500
        %v1502 = vmul.f32 %v1498, %v1284
        %v1503 = vmul.f32 %v1501, %v1284
        %v1504 = vsub.f32 %v1492, %v1502
        %v1505 = vsub.f32 %v1493, %v1503
        %v1506 = vmul.f32 %v1504, %v1504
        %v1507 = vmul.f32 %v1505, %v1505
        %v1508 = vsel %vm869, %v1506, 0.0
        %1509 = vadd.xlane.f32.xlu0 %v1508
        %v1510 = vpop.xlane.xlu0 %1509
        %v1511 = vsel %vm869, %v1507, 0.0
        %1512 = vadd.xlane.f32.xlu0 %v1511
        %v1513 = vpop.xlane.xlu0 %1512
        %v1514 = vmul.f32 %v1510, %v1284
        %v1515 = vmul.f32 %v1513, %v1284
        %v1516 = vadd.f32 %v1514, 1e-12
        %v1517 = vadd.f32 %v1515, 1e-12
        %v1518 = vrsqrt.pop %v1516
        %v1519 = vrsqrt.pop %v1517
        %v1520 = vmul.f32 %v1504, %v1518
        %v1521 = vmul.f32 %v1505, %v1519
        %v1523 = vlaneseq
        %v1524 = vshrl.u32 %v1523, 7
        %v1525 = vsub.s32 0, %v1524
        %v1526 = vrot.slane %v1494, %v1525
        %v1528 = vmul.f32 %v1520, %v1526
        %v1529 = vmul.f32 %v1521, %v1526
        %v1531 = vlaneseq
        %v1532 = vshrl.u32 %v1531, 7
        %v1533 = vsub.s32 0, %v1532
        %v1534 = vrot.slane %v1495, %v1533
        %v1536 = vadd.f32 %v1528, %v1534
        %v1537 = vadd.f32 %v1529, %v1534
        %1538 = vst.msk [vmem:[#allocation2] sm:$0xff] %vm869, %v1536
        %1539 = vst.msk [vmem:[#allocation2 + $0x8] sm:$0xff] %vm869, %v1537
        %p1540 = scmp.eq.s32.totalorder %s32, 1
        // Predicated region
        $region105: #{bert_class_forward.1} parent=99 // pred_check
          %p1541 = pneg %p1540
        $region106: #{bert_class_forward.1} parent=99 // pred_check_branch
          %1543 = sbr.rel (%p1541) target = $region108
        $region107: #{bert_class_forward.1} parent=99 // pred_region
          %v1544 = vld [vmem:[#allocation2] ss:$8 sm:$0x3]
          %v1545 = vpack.c.bf16 %v1544, %v1544
          %v1546 = vld [vmem:[%s16] sm:$0xf]
          %v1547 = vld [vmem:[%s16 + $0x4] sm:$0xf]
          %v1548 = vld [vmem:[%s16 + $0x8] sm:$0xf]
          %v1549 = vld [vmem:[%s16 + $0xc] sm:$0xf]
          %v1550 = vld [vmem:[%s17] sm:$0x1]
          %v1552 = vlaneseq
          %v1553 = vshrl.u32 %v1552, 7
          %v1554 = vsub.s32 0, %v1553
          %v1555 = vrot.slane %v1550, %v1554
          %v1561 = vunpack.c.l.b16 %v1546
          %v1562 = vunpack.c.l.b16 %v1547
          %v1563 = vunpack.c.l.b16 %v1548
          %v1564 = vunpack.c.l.b16 %v1549
          %v1565 = vpack.c.b16 %v1562, %v1561
          %v1566 = vpack.c.b16 %v1564, %v1563
          %v1570 = vsel %vm869, %v1545, 0
          %1572 = vmatprep.subr.bf16.mxu0 0
          %1573 = vmatpush1.bf16.msra.mxu0 %v1565
          %1574 = vmatprep.subr.bf16.mxu0 0
          %1575 = vmatpush1.bf16.msra.mxu0 %v1566
          %1576 = vmatprep.subr.bf16.mxu0 0
          %1577 = vmatpush1.bf16.msra.mxu0 0
          %1578 = vmatprep.subr.bf16.mxu0 0
          %1579 = vmatpush1.bf16.msra.mxu0 0
          %1580 = vmatprep.subr.bf16.mxu0 0
          %1581 = vmatpush1.bf16.msra.mxu0 0
          %1582 = vmatprep.subr.bf16.mxu0 0
          %1583 = vmatpush1.bf16.msra.mxu0 0
          %1584 = vmatprep.subr.bf16.mxu0 0
          %1585 = vmatpush1.bf16.msra.mxu0 0
          %1586 = vmatprep.subr.bf16.mxu0 0
          %1587 = vmatpush1.bf16.msra.mxu0 0
          %1588 = vmatprep.subr.bf16.mxu0 0
          %1589 = vmatpush1.bf16.msra.mxu0 0
          %1590 = vmatprep.subr.bf16.mxu0 0
          %1591 = vmatpush1.bf16.msra.mxu0 0
          %1592 = vmatprep.subr.bf16.mxu0 0
          %1593 = vmatpush1.bf16.msra.mxu0 0
          %1594 = vmatprep.subr.bf16.mxu0 0
          %1595 = vmatpush1.bf16.msra.mxu0 0
          %1596 = vmatprep.subr.bf16.mxu0 0
          %1597 = vmatpush1.bf16.msra.mxu0 0
          %1598 = vmatprep.subr.bf16.mxu0 0
          %1599 = vmatpush1.bf16.msra.mxu0 0
          %1600 = vmatprep.subr.bf16.mxu0 0
          %1601 = vmatpush1.bf16.msra.mxu0 0
          %1602 = vmatprep.subr.bf16.mxu0 0
          %1603 = vmatpush1.bf16.msra.mxu0 0
          %1604 = vmatprep.mubr.bf16.mxu0 0
          %1605 = vmatmul.mubr.bf16.gmra.mrb[0].mxu0 %v1570
          %v1606 = vpop.f32.mrb[0].mxu0
          %v1607 = vadd.f32 %v1555, %v1606
          %v1608 = vpop.f32.mrb[0].mxu0
          %v1609 = vpop.f32.mrb[0].mxu0
          %v1610 = vpop.f32.mrb[0].mxu0
          %1611 = vdwg.mxu0
          %v1612 = vtanh.pop %v1607
          %v1613 = vpack.c.bf16 %v1612, %v1612
          %v1614 = vld [vmem:[%s18] sm:$0xf]
          %v1615 = vld [vmem:[%s18 + $0x4] sm:$0xf]
          %v1616 = vld [vmem:[%s18 + $0x8] sm:$0xf]
          %v1617 = vld [vmem:[%s18 + $0xc] sm:$0xf]
          %v1618 = vld [vmem:[%s19] sm:$0x1]
          %v1620 = vlaneseq
          %v1621 = vshrl.u32 %v1620, 7
          %v1622 = vsub.s32 0, %v1621
          %v1623 = vrot.slane %v1618, %v1622
          %v1629 = vunpack.c.l.b16 %v1614
          %v1630 = vunpack.c.l.b16 %v1615
          %v1631 = vunpack.c.l.b16 %v1616
          %v1632 = vunpack.c.l.b16 %v1617
          %v1633 = vpack.c.b16 %v1630, %v1629
          %v1634 = vpack.c.b16 %v1632, %v1631
          %v1638 = vsel %vm869, %v1613, 0
          %1640 = vmatprep.subr.bf16.mxu0 0
          %1641 = vmatpush1.bf16.msra.mxu0 %v1633
          %1642 = vmatprep.subr.bf16.mxu0 0
          %1643 = vmatpush1.bf16.msra.mxu0 %v1634
          %1644 = vmatprep.subr.bf16.mxu0 0
          %1645 = vmatpush1.bf16.msra.mxu0 0
          %1646 = vmatprep.subr.bf16.mxu0 0
          %1647 = vmatpush1.bf16.msra.mxu0 0
          %1648 = vmatprep.subr.bf16.mxu0 0
          %1649 = vmatpush1.bf16.msra.mxu0 0
          %1650 = vmatprep.subr.bf16.mxu0 0
          %1651 = vmatpush1.bf16.msra.mxu0 0
          %1652 = vmatprep.subr.bf16.mxu0 0
          %1653 = vmatpush1.bf16.msra.mxu0 0
          %1654 = vmatprep.subr.bf16.mxu0 0
          %1655 = vmatpush1.bf16.msra.mxu0 0
          %1656 = vmatprep.subr.bf16.mxu0 0
          %1657 = vmatpush1.bf16.msra.mxu0 0
          %1658 = vmatprep.subr.bf16.mxu0 0
          %1659 = vmatpush1.bf16.msra.mxu0 0
          %1660 = vmatprep.subr.bf16.mxu0 0
          %1661 = vmatpush1.bf16.msra.mxu0 0
          %1662 = vmatprep.subr.bf16.mxu0 0
          %1663 = vmatpush1.bf16.msra.mxu0 0
          %1664 = vmatprep.subr.bf16.mxu0 0
          %1665 = vmatpush1.bf16.msra.mxu0 0
          %1666 = vmatprep.subr.bf16.mxu0 0
          %1667 = vmatpush1.bf16.msra.mxu0 0
          %1668 = vmatprep.subr.bf16.mxu0 0
          %1669 = vmatpush1.bf16.msra.mxu0 0
          %1670 = vmatprep.subr.bf16.mxu0 0
          %1671 = vmatpush1.bf16.msra.mxu0 0
          %1672 = vmatprep.mubr.bf16.mxu0 0
          %1673 = vmatmul.mubr.bf16.gmra.mrb[0].mxu0 %v1638
          %v1674 = vpop.f32.mrb[0].mxu0
          %v1675 = vadd.f32 %v1623, %v1674
          %v1676 = vpop.f32.mrb[0].mxu0
          %v1677 = vpop.f32.mrb[0].mxu0
          %v1678 = vpop.f32.mrb[0].mxu0
          %1679 = vdwg.mxu0
          %vm1680 = vcmask 17408
          %1681 = vst.msk [vmem:[#allocation3] sm:$0x3] %vm1680, %v1675
        $region108: #{bert_class_forward.1} parent=99 // pred_fallthru
          _
        // Predicated region
        $region109: #{bert_class_forward.1} parent=99 // pred_check
          %p1682 = pneg %p525
        $region110: #{bert_class_forward.1} parent=99 // pred_check_branch
          %1684 = sbr.rel (%p1682) target = $region112
        $region111: #{bert_class_forward.1} parent=99 // pred_region
          %s1686 = ssub.s32 32, 32
          %1687 = vsyncadd [#allocation4], %s1686
          %s1689 = sshll.u32 [#allocation3], 4
          %s1690 = int_to_ptr.vmem [resolvable:$true] %s1689
          %1692 = dma.vmem_to_hbm [thread:$0]  %s1690, 32, %s20, [#allocation4]
        $region112: #{bert_class_forward.1} parent=99 // pred_fallthru
          _
        // Predicated region
        $region113: #{bert_class_forward.1} parent=99 // pred_check
          %p1693 = pneg %p525
        $region114: #{bert_class_forward.1} parent=99 // pred_check_branch
          %1695 = sbr.rel (%p1693) target = $region116
        $region115: #{bert_class_forward.1} parent=99 // pred_region
          %1696 = dma.done [#allocation4], 32
        $region116: #{bert_class_forward.1} parent=99 // pred_fallthru
          _
      $region100: #{bert_class_forward.1} parent=5 // pred_fallthru
        _
      %p1697 = scmp.le.s32.totalorder 2, %s27
      // Predicated region
      $region117: #{bert_class_forward.1} parent=5 // pred_check
        %p1698 = pneg %p1697
      $region118: #{bert_class_forward.1} parent=5 // pred_check_branch
        %1700 = sbr.rel (%p1698) target = $region120
      $region119: #{bert_class_forward.1} parent=5 // pred_region
        %s1701 = ssub.s32 %s27, 2
      $region120: #{bert_class_forward.1} parent=5 // pred_fallthru
        _
    $region6: #{bert_class_forward.1} parent=1 // loop_footer
      %s31 = sadd.s32 1, %s27
    $region7: #{bert_class_forward.1} parent=1 // loop_footer_branch
      %26 = sbr.rel target = $region3
    $region8: #{bert_class_forward.1} parent=1 // loop_exit
      _
    %1702 = vsyncpa [#allocation4], 1
    %s1703 = scalar_lea.sflag [#allocation4], 1
    %1704 = vsyncpa %s1703, 1

</llo_original>
